<compile_context>
chip_gen: v7x
topology: tpu7x:2x2x1
jax: 0.10.0
libtpu: 0.0.40
codegen_flags: <defaults>
</compile_context>

<pallas_src>
import jax
import jax.numpy as jnp
from jax.experimental import pallas as pl
from jax.experimental.pallas import tpu as pltpu

VOCAB = 64        # vocab_size
VPAD = 128        # vocab padded to full 128-lane vreg width (lane-dense store)
EMB = 32          # embedding_dim (== hidden_dim; tied fc1-weight embedding)
HID = 32          # hidden_dim
LAYERS = 2        # "gru_layers" (plain tanh nn.RNN layers)
T = 8             # time steps
B = 2             # batch (number of sequences)
BP = 8            # batch padded to a full sublane group
N = T * BP        # rows processed inside the kernel (time-major, batch-inner)

# ---- row offsets inside the packed 32-lane weight slab (all 8-aligned) ----
_R_FUSED1 = 0                       # (VOCAB, HID): fc1_w @ W_ih1^T + b1 (gather+proj fold)
_R_WHH1 = _R_FUSED1 + VOCAB         # 64  : (HID, HID)  W_hh1^T
_R_W2CAT = _R_WHH1 + HID            # 96  : (2*HID, HID) [W_ih2^T ; W_hh2^T]
_R_HL1 = _R_W2CAT + 2 * HID         # 160 : (HID, HID)  hl_1.weight^T
_R_HL2 = _R_HL1 + HID               # 192 : (HID, HID)  hl_2.weight^T
W32_ROWS = _R_HL2 + HID             # 224

# ---- row offsets inside the packed 128-lane head/bias slab ----
_R_HEAD_W = 0                       # (HID, VPAD) fc1.weight^T padded (zeros on pad lanes)
_R_HEAD_B = HID                     # 32 : fc1.bias padded (-1e30 on pad lanes)
_R_RB2 = HID + 1                    # 33 : b_ih2 + b_hh2 in lanes [0:HID]
_R_HL1B = HID + 2                   # 34 : hl_1.bias     in lanes [0:HID]
_R_HL2B = HID + 3                   # 35 : hl_2.bias     in lanes [0:HID]
W128_ROWS = 40                      # padded to a multiple of 8 sublanes


# --------------------------------------------------------------------------
# Fused kernel: gather -> interleaved 2-layer tanh-RNN -> MLP head -> log_softmax
# Whole working set (< 150 KiB) lives in VMEM; no grid.
# --------------------------------------------------------------------------
def _fused_fwd_kernel(tok_ref, w32_ref, w128_ref, out_ref, h2_buf):
    # ---- loop-invariant weight/bias views (static, sublane-aligned slices) ----
    fused1 = w32_ref[_R_FUSED1:_R_FUSED1 + VOCAB, :]      # (64, 32)
    whh1 = w32_ref[_R_WHH1:_R_WHH1 + HID, :]              # (32, 32)
    w2cat = w32_ref[_R_W2CAT:_R_W2CAT + 2 * HID, :]       # (64, 32)
    hl1_w = w32_ref[_R_HL1:_R_HL1 + HID, :]               # (32, 32)
    hl2_w = w32_ref[_R_HL2:_R_HL2 + HID, :]               # (32, 32)
    w_head = w128_ref[_R_HEAD_W:_R_HEAD_W + HID, :]       # (32, 128)
    b_head = w128_ref[_R_HEAD_B:_R_HEAD_B + 1, :]         # (1, 128) -1e30 on pads
    rb2 = w128_ref[_R_RB2:_R_RB2 + 1, 0:HID]              # (1, 32)
    hl1_b = w128_ref[_R_HL1B:_R_HL1B + 1, 0:HID]          # (1, 32)
    hl2_b = w128_ref[_R_HL2B:_R_HL2B + 1, 0:HID]          # (1, 32)

    # ---- tied-embedding gather + layer-1 input projection, fused & hoisted ----
    # one-hot rows sum to 1, so the layer-1 bias folded into `fused1` is exact.
    idx = tok_ref[...]                                            # (N, 1) int32
    lane = jax.lax.broadcasted_iota(jnp.int32, (N, VOCAB), 1)     # (N, VOCAB)
    onehot = (lane == idx).astype(jnp.float32)
    xp1 = jnp.dot(onehot, fused1, preferred_element_type=jnp.float32)  # (N, HID)

    # ---- interleaved (software-pipelined) 2-layer tanh recurrence ----
    # Pipeline state: h1 = h1[t-1], h2 = h2[t-2]; at iteration t we compute
    # h1[t] and h2[t-1], which only depend on that state and are independent
    # of each other -> their MXU pushes / tanh EUP ops overlap.
    h1 = jnp.tanh(xp1[0:BP])                                 # h1[0]  (h1[-1] = 0)
    h2 = jnp.zeros((BP, HID), jnp.float32)                   # h2[-1] = 0
    for t in range(1, T):                                    # static unroll
        h1_next = jnp.tanh(
            xp1[t * BP:(t + 1) * BP]
            + jnp.dot(h1, whh1, preferred_element_type=jnp.float32))      # h1[t]
        h2 = jnp.tanh(
            jnp.dot(jnp.concatenate([h1, h2], axis=-1), w2cat,
                    preferred_element_type=jnp.float32) + rb2)            # h2[t-1]
        h2_buf[(t - 1) * BP:t * BP, :] = h2
        h1 = h1_next
    # drain: h2[T-1]
    h2 = jnp.tanh(
        jnp.dot(jnp.concatenate([h1, h2], axis=-1), w2cat,
                preferred_element_type=jnp.float32) + rb2)
    h2_buf[(T - 1) * BP:T * BP, :] = h2
    # TODO(synk): nn.RNN inter-layer dropout (training-mode only) omitted;
    # this is the eval-mode forward.

    # ---- MLP head + log_softmax (vocab padded to 128 lanes) ----
    x = h2_buf[...]                                               # (N, HID)
    a1 = jnp.tanh(jnp.dot(x, hl1_w, preferred_element_type=jnp.float32) + hl1_b)
    a2 = jnp.tanh(jnp.dot(a1, hl2_w, preferred_element_type=jnp.float32) + hl2_b)
    logits = jnp.dot(a2, w_head, preferred_element_type=jnp.float32) + b_head
    # Padded columns carry a -1e30 bias -> exp underflows to 0 -> normalizer OK.
    m = jnp.max(logits, axis=-1, keepdims=True)
    s = logits - m
    lse = jnp.log(jnp.sum(jnp.exp(s), axis=-1, keepdims=True))
    out_ref[...] = s - lse                                        # lane-dense (N, 128)


# --------------------------------------------------------------------------
# Parameters (deterministic init, PyTorch-style uniform(-1/sqrt(H), 1/sqrt(H)))
# plus host-side packing into the two kernel slabs.
# --------------------------------------------------------------------------
def init_params(key):
    ks = jax.random.split(key, 10)
    bound = 1.0 / jnp.sqrt(jnp.float32(HID))
    u = lambda k, shape: jax.random.uniform(k, shape, jnp.float32, -bound, bound)

    w_ih = u(ks[0], (LAYERS, HID, EMB))     # PyTorch layout (H, E)
    w_hh = u(ks[1], (LAYERS, HID, HID))     # PyTorch layout (H, H)
    b_ih = u(ks[2], (LAYERS, HID))
    b_hh = u(ks[3], (LAYERS, HID))
    fc1_w = u(ks[4], (VOCAB, HID))
    fc1_b = u(ks[5], (VOCAB,))
    hl1_w = u(ks[6], (HID, HID))
    hl1_b = u(ks[7], (HID,))
    hl2_w = u(ks[8], (HID, HID))
    hl2_b = u(ks[9], (HID,))

    w_ih_t = jnp.transpose(w_ih, (0, 2, 1))     # (L, E, H)
    w_hh_t = jnp.transpose(w_hh, (0, 2, 1))     # (L, H, H)
    rnn_b = b_ih + b_hh                         # (L, H)

    # --- 32-lane weight slab: gather+proj fold, recurrences, hidden layers ---
    fused1 = jnp.dot(fc1_w, w_ih_t[0],
                     precision=jax.lax.Precision.HIGHEST) + rnn_b[0][None, :]
    w2cat = jnp.concatenate([w_ih_t[1], w_hh_t[1]], axis=0)       # (2H, H)
    w32_slab = jnp.concatenate(
        [fused1, w_hh_t[0], w2cat, hl1_w.T, hl2_w.T], axis=0)     # (224, 32)
    assert w32_slab.shape == (W32_ROWS, HID)

    # --- 128-lane slab: padded head projection + all biases ---
    fc1_w_t_pad = jnp.zeros((HID, VPAD), jnp.float32).at[:, :VOCAB].set(fc1_w.T)
    fc1_b_pad = jnp.full((VPAD,), -1e30, jnp.float32).at[:VOCAB].set(fc1_b)

    def row128(v):
        return jnp.zeros((VPAD,), jnp.float32).at[:v.shape[0]].set(v)

    w128_slab = jnp.concatenate([
        fc1_w_t_pad,                                   # rows 0:32
        fc1_b_pad[None, :],                            # row 32
        row128(rnn_b[1])[None, :],                     # row 33
        row128(hl1_b)[None, :],                        # row 34
        row128(hl2_b)[None, :],                        # row 35
        jnp.zeros((W128_ROWS - (HID + 4), VPAD), jnp.float32),   # rows 36:40 pad
    ], axis=0)
    assert w128_slab.shape == (W128_ROWS, VPAD)

    return dict(
        # packed slabs consumed by the fused kernel
        w32_slab=w32_slab, w128_slab=w128_slab,
        # unfused copies for the pure-JAX reference
        fc1_w=fc1_w, fc1_w_t=fc1_w.T, fc1_b=fc1_b.reshape(1, VOCAB),
        hl1_w_t=hl1_w.T, hl1_b=hl1_b.reshape(1, HID),
        hl2_w_t=hl2_w.T, hl2_b=hl2_b.reshape(1, HID),
        w_ih_t=w_ih_t, w_hh_t=w_hh_t, rnn_b=rnn_b.reshape(LAYERS, 1, HID),
    )


# --------------------------------------------------------------------------
# Forward pass (single fused Pallas kernel) and a pure-JAX reference.
# --------------------------------------------------------------------------
def forward(params, tokens):
    T_, B_ = tokens.shape
    # Pad batch 2 -> 8 (sublane group); padded rows use token 0 and are dropped
    # at the end (every op is row-independent, so they cannot leak).
    tok_pad = jnp.zeros((T_, BP), jnp.int32).at[:, :B_].set(tokens)
    tok_flat = tok_pad.reshape(T_ * BP, 1)

    out_full = pl.pallas_call(
        _fused_fwd_kernel,
        out_shape=jax.ShapeDtypeStruct((T_ * BP, VPAD), jnp.float32),
        in_specs=[
            pl.BlockSpec(memory_space=pltpu.MemorySpace.VMEM),   # tokens
            pl.BlockSpec(memory_space=pltpu.MemorySpace.VMEM),   # 32-lane weight slab
            pl.BlockSpec(memory_space=pltpu.MemorySpace.VMEM),   # 128-lane head/bias slab
        ],
        out_specs=pl.BlockSpec(memory_space=pltpu.MemorySpace.VMEM),
        scratch_shapes=[pltpu.VMEM((T_ * BP, HID), jnp.float32)],  # layer-2 outputs
    )(tok_flat, params["w32_slab"], params["w128_slab"])

    # Drop batch / vocab padding -> packed (T*B, VOCAB) log-probs.
    # (If downstream can index the padded layout, return out_full directly.)
    return out_full.reshape(T_, BP, VPAD)[:, :B_, :VOCAB].reshape(T_ * B_, VOCAB)


def forward_ref(params, tokens):
    flat = tokens.reshape(-1)
    x = params["fc1_w"][flat].reshape(T, B, HID)
    for l in range(LAYERS):
        h = jnp.zeros((B, HID), jnp.float32)
        outs = []
        for t in range(T):
            h = jnp.tanh(x[t] @ params["w_ih_t"][l]
                         + h @ params["w_hh_t"][l]
                         + params["rnn_b"][l])
            outs.append(h)
        x = jnp.stack(outs)
    h = x.reshape(T * B, HID)
    h1 = jnp.tanh(h @ params["hl1_w_t"] + params["hl1_b"])
    h2 = jnp.tanh(h1 @ params["hl2_w_t"] + params["hl2_b"])
    logits = h2 @ params["fc1_w_t"] + params["fc1_b"]
    return jax.nn.log_softmax(logits, axis=1)


if __name__ == "__main__":
    key = jax.random.PRNGKey(0)
    pkey, tkey = jax.random.split(key)
    params = init_params(pkey)
    tokens = jax.random.randint(tkey, (T, B), 0, VOCAB, dtype=jnp.int32)

    fwd = jax.jit(forward)
    out = jax.block_until_ready(fwd(params, tokens))
    ref = jax.block_until_ready(forward_ref(params, tokens))

    assert out.shape == (T * B, VOCAB)
    # Tolerance slightly above the previous 1e-5: the fused projections change
    # f32 accumulation order (still full-f32 MXU math, no bf16 operand cast).
    assert jnp.allclose(out, ref, atol=2e-5, rtol=1e-5), "mismatch vs JAX reference"
    print("KERNEL_OK")
</pallas_src>

<mosaic_0001>
module attributes {stable_mosaic.version = 11 : i64} {
  func.func @_fused_fwd_kernel(%arg0: memref<64x1xi32, #tpu.memory_space<vmem>>, %arg1: memref<224x32xf32, #tpu.memory_space<vmem>>, %arg2: memref<40x128xf32, #tpu.memory_space<vmem>>, %arg3: memref<64x128xf32, #tpu.memory_space<vmem>>, %arg4: memref<64x32xf32, #tpu.memory_space<vmem>>) attributes {dimension_semantics = [], scalar_prefetch = 0 : i64, scratch_operands = 1 : i64, tpu.core_type = #tpu.core_type<tc>} {
    %c0 = arith.constant 0 : index
    %c0_0 = arith.constant 0 : index
    %0 = vector.load %arg1[%c0, %c0_0] : memref<224x32xf32, #tpu.memory_space<vmem>>, vector<64x32xf32>
    %c64 = arith.constant 64 : index
    %c0_1 = arith.constant 0 : index
    %1 = vector.load %arg1[%c64, %c0_1] : memref<224x32xf32, #tpu.memory_space<vmem>>, vector<32x32xf32>
    %c96 = arith.constant 96 : index
    %c0_2 = arith.constant 0 : index
    %2 = vector.load %arg1[%c96, %c0_2] : memref<224x32xf32, #tpu.memory_space<vmem>>, vector<64x32xf32>
    %c160 = arith.constant 160 : index
    %c0_3 = arith.constant 0 : index
    %3 = vector.load %arg1[%c160, %c0_3] : memref<224x32xf32, #tpu.memory_space<vmem>>, vector<32x32xf32>
    %c192 = arith.constant 192 : index
    %c0_4 = arith.constant 0 : index
    %4 = vector.load %arg1[%c192, %c0_4] : memref<224x32xf32, #tpu.memory_space<vmem>>, vector<32x32xf32>
    %c0_5 = arith.constant 0 : index
    %c0_6 = arith.constant 0 : index
    %5 = vector.load %arg2[%c0_5, %c0_6] : memref<40x128xf32, #tpu.memory_space<vmem>>, vector<32x128xf32>
    %c32 = arith.constant 32 : index
    %c0_7 = arith.constant 0 : index
    %6 = vector.load %arg2[%c32, %c0_7] : memref<40x128xf32, #tpu.memory_space<vmem>>, vector<1x128xf32>
    %c33 = arith.constant 33 : index
    %c0_8 = arith.constant 0 : index
    %7 = vector.load %arg2[%c33, %c0_8] : memref<40x128xf32, #tpu.memory_space<vmem>>, vector<1x32xf32>
    %c34 = arith.constant 34 : index
    %c0_9 = arith.constant 0 : index
    %8 = vector.load %arg2[%c34, %c0_9] : memref<40x128xf32, #tpu.memory_space<vmem>>, vector<1x32xf32>
    %c35 = arith.constant 35 : index
    %c0_10 = arith.constant 0 : index
    %9 = vector.load %arg2[%c35, %c0_10] : memref<40x128xf32, #tpu.memory_space<vmem>>, vector<1x32xf32>
    %c0_11 = arith.constant 0 : index
    %c0_12 = arith.constant 0 : index
    %10 = vector.load %arg0[%c0_11, %c0_12] : memref<64x1xi32, #tpu.memory_space<vmem>>, vector<64x1xi32>
    %11 = tpu.iota {dimensions = array<i32: 1>} : vector<64x64xi32>
    %12 = vector.broadcast %10 : vector<64x1xi32> to vector<64x64xi32>
    %13 = arith.cmpi eq, %11, %12 : vector<64x64xi32>
    %14 = arith.extui %13 : vector<64x64xi1> to vector<64x64xi32>
    %15 = arith.sitofp %14 : vector<64x64xi32> to vector<64x64xf32>
    %cst = arith.constant dense<0.000000e+00> : vector<64x32xf32>
    %16 = tpu.matmul %15, %0, %cst {dimension_numbers = #tpu.dot_dimension_numbers<[1], [0], [0], [1], [0, 0, 1, 1], [], []>} : vector<64x64xf32>, vector<64x32xf32>, vector<64x32xf32> -> vector<64x32xf32>
    %17 = vector.extract_strided_slice %16 {offsets = [0, 0], sizes = [8, 32], strides = [1, 1]} : vector<64x32xf32> to vector<8x32xf32>
    %18 = math.tanh %17 : vector<8x32xf32>
    %cst_13 = arith.constant 0.000000e+00 : f32
    %19 = vector.broadcast %cst_13 : f32 to vector<8x32xf32>
    %20 = vector.extract_strided_slice %16 {offsets = [8, 0], sizes = [8, 32], strides = [1, 1]} : vector<64x32xf32> to vector<8x32xf32>
    %cst_14 = arith.constant dense<0.000000e+00> : vector<8x32xf32>
    %21 = tpu.matmul %18, %1, %cst_14 {dimension_numbers = #tpu.dot_dimension_numbers<[1], [0], [0], [1], [0, 0, 1, 1], [], []>} : vector<8x32xf32>, vector<32x32xf32>, vector<8x32xf32> -> vector<8x32xf32>
    %22 = arith.addf %20, %21 : vector<8x32xf32>
    %23 = math.tanh %22 : vector<8x32xf32>
    %24 = tpu.concatenate %18, %19 in 1 : vector<8x32xf32>, vector<8x32xf32> -> vector<8x64xf32>
    %cst_15 = arith.constant dense<0.000000e+00> : vector<8x32xf32>
    %25 = tpu.matmul %24, %2, %cst_15 {dimension_numbers = #tpu.dot_dimension_numbers<[1], [0], [0], [1], [0, 0, 1, 1], [], []>} : vector<8x64xf32>, vector<64x32xf32>, vector<8x32xf32> -> vector<8x32xf32>
    %26 = vector.broadcast %7 : vector<1x32xf32> to vector<8x32xf32>
    %27 = arith.addf %25, %26 : vector<8x32xf32>
    %28 = math.tanh %27 : vector<8x32xf32>
    %c0_16 = arith.constant 0 : index
    %c0_17 = arith.constant 0 : index
    %29 = vector.load %arg4[%c0_16, %c0_17] : memref<64x32xf32, #tpu.memory_space<vmem>>, vector<8x32xf32>
    tpu.vector_store %arg4[%c0_16, %c0_17], %28 {strides = array<i32>} : memref<64x32xf32, #tpu.memory_space<vmem>>, vector<8x32xf32>,
    %30 = vector.extract_strided_slice %16 {offsets = [16, 0], sizes = [8, 32], strides = [1, 1]} : vector<64x32xf32> to vector<8x32xf32>
    %cst_18 = arith.constant dense<0.000000e+00> : vector<8x32xf32>
    %31 = tpu.matmul %23, %1, %cst_18 {dimension_numbers = #tpu.dot_dimension_numbers<[1], [0], [0], [1], [0, 0, 1, 1], [], []>} : vector<8x32xf32>, vector<32x32xf32>, vector<8x32xf32> -> vector<8x32xf32>
    %32 = arith.addf %30, %31 : vector<8x32xf32>
    %33 = math.tanh %32 : vector<8x32xf32>
    %34 = tpu.concatenate %23, %28 in 1 : vector<8x32xf32>, vector<8x32xf32> -> vector<8x64xf32>
    %cst_19 = arith.constant dense<0.000000e+00> : vector<8x32xf32>
    %35 = tpu.matmul %34, %2, %cst_19 {dimension_numbers = #tpu.dot_dimension_numbers<[1], [0], [0], [1], [0, 0, 1, 1], [], []>} : vector<8x64xf32>, vector<64x32xf32>, vector<8x32xf32> -> vector<8x32xf32>
    %36 = vector.broadcast %7 : vector<1x32xf32> to vector<8x32xf32>
    %37 = arith.addf %35, %36 : vector<8x32xf32>
    %38 = math.tanh %37 : vector<8x32xf32>
    %c8 = arith.constant 8 : index
    %c0_20 = arith.constant 0 : index
    %39 = vector.load %arg4[%c8, %c0_20] : memref<64x32xf32, #tpu.memory_space<vmem>>, vector<8x32xf32>
    tpu.vector_store %arg4[%c8, %c0_20], %38 {strides = array<i32>} : memref<64x32xf32, #tpu.memory_space<vmem>>, vector<8x32xf32>,
    %40 = vector.extract_strided_slice %16 {offsets = [24, 0], sizes = [8, 32], strides = [1, 1]} : vector<64x32xf32> to vector<8x32xf32>
    %cst_21 = arith.constant dense<0.000000e+00> : vector<8x32xf32>
    %41 = tpu.matmul %33, %1, %cst_21 {dimension_numbers = #tpu.dot_dimension_numbers<[1], [0], [0], [1], [0, 0, 1, 1], [], []>} : vector<8x32xf32>, vector<32x32xf32>, vector<8x32xf32> -> vector<8x32xf32>
    %42 = arith.addf %40, %41 : vector<8x32xf32>
    %43 = math.tanh %42 : vector<8x32xf32>
    %44 = tpu.concatenate %33, %38 in 1 : vector<8x32xf32>, vector<8x32xf32> -> vector<8x64xf32>
    %cst_22 = arith.constant dense<0.000000e+00> : vector<8x32xf32>
    %45 = tpu.matmul %44, %2, %cst_22 {dimension_numbers = #tpu.dot_dimension_numbers<[1], [0], [0], [1], [0, 0, 1, 1], [], []>} : vector<8x64xf32>, vector<64x32xf32>, vector<8x32xf32> -> vector<8x32xf32>
    %46 = vector.broadcast %7 : vector<1x32xf32> to vector<8x32xf32>
    %47 = arith.addf %45, %46 : vector<8x32xf32>
    %48 = math.tanh %47 : vector<8x32xf32>
    %c16 = arith.constant 16 : index
    %c0_23 = arith.constant 0 : index
    %49 = vector.load %arg4[%c16, %c0_23] : memref<64x32xf32, #tpu.memory_space<vmem>>, vector<8x32xf32>
    tpu.vector_store %arg4[%c16, %c0_23], %48 {strides = array<i32>} : memref<64x32xf32, #tpu.memory_space<vmem>>, vector<8x32xf32>,
    %50 = vector.extract_strided_slice %16 {offsets = [32, 0], sizes = [8, 32], strides = [1, 1]} : vector<64x32xf32> to vector<8x32xf32>
    %cst_24 = arith.constant dense<0.000000e+00> : vector<8x32xf32>
    %51 = tpu.matmul %43, %1, %cst_24 {dimension_numbers = #tpu.dot_dimension_numbers<[1], [0], [0], [1], [0, 0, 1, 1], [], []>} : vector<8x32xf32>, vector<32x32xf32>, vector<8x32xf32> -> vector<8x32xf32>
    %52 = arith.addf %50, %51 : vector<8x32xf32>
    %53 = math.tanh %52 : vector<8x32xf32>
    %54 = tpu.concatenate %43, %48 in 1 : vector<8x32xf32>, vector<8x32xf32> -> vector<8x64xf32>
    %cst_25 = arith.constant dense<0.000000e+00> : vector<8x32xf32>
    %55 = tpu.matmul %54, %2, %cst_25 {dimension_numbers = #tpu.dot_dimension_numbers<[1], [0], [0], [1], [0, 0, 1, 1], [], []>} : vector<8x64xf32>, vector<64x32xf32>, vector<8x32xf32> -> vector<8x32xf32>
    %56 = vector.broadcast %7 : vector<1x32xf32> to vector<8x32xf32>
    %57 = arith.addf %55, %56 : vector<8x32xf32>
    %58 = math.tanh %57 : vector<8x32xf32>
    %c24 = arith.constant 24 : index
    %c0_26 = arith.constant 0 : index
    %59 = vector.load %arg4[%c24, %c0_26] : memref<64x32xf32, #tpu.memory_space<vmem>>, vector<8x32xf32>
    tpu.vector_store %arg4[%c24, %c0_26], %58 {strides = array<i32>} : memref<64x32xf32, #tpu.memory_space<vmem>>, vector<8x32xf32>,
    %60 = vector.extract_strided_slice %16 {offsets = [40, 0], sizes = [8, 32], strides = [1, 1]} : vector<64x32xf32> to vector<8x32xf32>
    %cst_27 = arith.constant dense<0.000000e+00> : vector<8x32xf32>
    %61 = tpu.matmul %53, %1, %cst_27 {dimension_numbers = #tpu.dot_dimension_numbers<[1], [0], [0], [1], [0, 0, 1, 1], [], []>} : vector<8x32xf32>, vector<32x32xf32>, vector<8x32xf32> -> vector<8x32xf32>
    %62 = arith.addf %60, %61 : vector<8x32xf32>
    %63 = math.tanh %62 : vector<8x32xf32>
    %64 = tpu.concatenate %53, %58 in 1 : vector<8x32xf32>, vector<8x32xf32> -> vector<8x64xf32>
    %cst_28 = arith.constant dense<0.000000e+00> : vector<8x32xf32>
    %65 = tpu.matmul %64, %2, %cst_28 {dimension_numbers = #tpu.dot_dimension_numbers<[1], [0], [0], [1], [0, 0, 1, 1], [], []>} : vector<8x64xf32>, vector<64x32xf32>, vector<8x32xf32> -> vector<8x32xf32>
    %66 = vector.broadcast %7 : vector<1x32xf32> to vector<8x32xf32>
    %67 = arith.addf %65, %66 : vector<8x32xf32>
    %68 = math.tanh %67 : vector<8x32xf32>
    %c32_29 = arith.constant 32 : index
    %c0_30 = arith.constant 0 : index
    %69 = vector.load %arg4[%c32_29, %c0_30] : memref<64x32xf32, #tpu.memory_space<vmem>>, vector<8x32xf32>
    tpu.vector_store %arg4[%c32_29, %c0_30], %68 {strides = array<i32>} : memref<64x32xf32, #tpu.memory_space<vmem>>, vector<8x32xf32>,
    %70 = vector.extract_strided_slice %16 {offsets = [48, 0], sizes = [8, 32], strides = [1, 1]} : vector<64x32xf32> to vector<8x32xf32>
    %cst_31 = arith.constant dense<0.000000e+00> : vector<8x32xf32>
    %71 = tpu.matmul %63, %1, %cst_31 {dimension_numbers = #tpu.dot_dimension_numbers<[1], [0], [0], [1], [0, 0, 1, 1], [], []>} : vector<8x32xf32>, vector<32x32xf32>, vector<8x32xf32> -> vector<8x32xf32>
    %72 = arith.addf %70, %71 : vector<8x32xf32>
    %73 = math.tanh %72 : vector<8x32xf32>
    %74 = tpu.concatenate %63, %68 in 1 : vector<8x32xf32>, vector<8x32xf32> -> vector<8x64xf32>
    %cst_32 = arith.constant dense<0.000000e+00> : vector<8x32xf32>
    %75 = tpu.matmul %74, %2, %cst_32 {dimension_numbers = #tpu.dot_dimension_numbers<[1], [0], [0], [1], [0, 0, 1, 1], [], []>} : vector<8x64xf32>, vector<64x32xf32>, vector<8x32xf32> -> vector<8x32xf32>
    %76 = vector.broadcast %7 : vector<1x32xf32> to vector<8x32xf32>
    %77 = arith.addf %75, %76 : vector<8x32xf32>
    %78 = math.tanh %77 : vector<8x32xf32>
    %c40 = arith.constant 40 : index
    %c0_33 = arith.constant 0 : index
    %79 = vector.load %arg4[%c40, %c0_33] : memref<64x32xf32, #tpu.memory_space<vmem>>, vector<8x32xf32>
    tpu.vector_store %arg4[%c40, %c0_33], %78 {strides = array<i32>} : memref<64x32xf32, #tpu.memory_space<vmem>>, vector<8x32xf32>,
    %80 = vector.extract_strided_slice %16 {offsets = [56, 0], sizes = [8, 32], strides = [1, 1]} : vector<64x32xf32> to vector<8x32xf32>
    %cst_34 = arith.constant dense<0.000000e+00> : vector<8x32xf32>
    %81 = tpu.matmul %73, %1, %cst_34 {dimension_numbers = #tpu.dot_dimension_numbers<[1], [0], [0], [1], [0, 0, 1, 1], [], []>} : vector<8x32xf32>, vector<32x32xf32>, vector<8x32xf32> -> vector<8x32xf32>
    %82 = arith.addf %80, %81 : vector<8x32xf32>
    %83 = math.tanh %82 : vector<8x32xf32>
    %84 = tpu.concatenate %73, %78 in 1 : vector<8x32xf32>, vector<8x32xf32> -> vector<8x64xf32>
    %cst_35 = arith.constant dense<0.000000e+00> : vector<8x32xf32>
    %85 = tpu.matmul %84, %2, %cst_35 {dimension_numbers = #tpu.dot_dimension_numbers<[1], [0], [0], [1], [0, 0, 1, 1], [], []>} : vector<8x64xf32>, vector<64x32xf32>, vector<8x32xf32> -> vector<8x32xf32>
    %86 = vector.broadcast %7 : vector<1x32xf32> to vector<8x32xf32>
    %87 = arith.addf %85, %86 : vector<8x32xf32>
    %88 = math.tanh %87 : vector<8x32xf32>
    %c48 = arith.constant 48 : index
    %c0_36 = arith.constant 0 : index
    %89 = vector.load %arg4[%c48, %c0_36] : memref<64x32xf32, #tpu.memory_space<vmem>>, vector<8x32xf32>
    tpu.vector_store %arg4[%c48, %c0_36], %88 {strides = array<i32>} : memref<64x32xf32, #tpu.memory_space<vmem>>, vector<8x32xf32>,
    %90 = tpu.concatenate %83, %88 in 1 : vector<8x32xf32>, vector<8x32xf32> -> vector<8x64xf32>
    %cst_37 = arith.constant dense<0.000000e+00> : vector<8x32xf32>
    %91 = tpu.matmul %90, %2, %cst_37 {dimension_numbers = #tpu.dot_dimension_numbers<[1], [0], [0], [1], [0, 0, 1, 1], [], []>} : vector<8x64xf32>, vector<64x32xf32>, vector<8x32xf32> -> vector<8x32xf32>
    %92 = vector.broadcast %7 : vector<1x32xf32> to vector<8x32xf32>
    %93 = arith.addf %91, %92 : vector<8x32xf32>
    %94 = math.tanh %93 : vector<8x32xf32>
    %c56 = arith.constant 56 : index
    %c0_38 = arith.constant 0 : index
    %95 = vector.load %arg4[%c56, %c0_38] : memref<64x32xf32, #tpu.memory_space<vmem>>, vector<8x32xf32>
    tpu.vector_store %arg4[%c56, %c0_38], %94 {strides = array<i32>} : memref<64x32xf32, #tpu.memory_space<vmem>>, vector<8x32xf32>,
    %c0_39 = arith.constant 0 : index
    %c0_40 = arith.constant 0 : index
    %96 = vector.load %arg4[%c0_39, %c0_40] : memref<64x32xf32, #tpu.memory_space<vmem>>, vector<64x32xf32>
    %cst_41 = arith.constant dense<0.000000e+00> : vector<64x32xf32>
    %97 = tpu.matmul %96, %3, %cst_41 {dimension_numbers = #tpu.dot_dimension_numbers<[1], [0], [0], [1], [0, 0, 1, 1], [], []>} : vector<64x32xf32>, vector<32x32xf32>, vector<64x32xf32> -> vector<64x32xf32>
    %98 = vector.broadcast %8 : vector<1x32xf32> to vector<64x32xf32>
    %99 = arith.addf %97, %98 : vector<64x32xf32>
    %100 = math.tanh %99 : vector<64x32xf32>
    %cst_42 = arith.constant dense<0.000000e+00> : vector<64x32xf32>
    %101 = tpu.matmul %100, %4, %cst_42 {dimension_numbers = #tpu.dot_dimension_numbers<[1], [0], [0], [1], [0, 0, 1, 1], [], []>} : vector<64x32xf32>, vector<32x32xf32>, vector<64x32xf32> -> vector<64x32xf32>
    %102 = vector.broadcast %9 : vector<1x32xf32> to vector<64x32xf32>
    %103 = arith.addf %101, %102 : vector<64x32xf32>
    %104 = math.tanh %103 : vector<64x32xf32>
    %cst_43 = arith.constant dense<0.000000e+00> : vector<64x128xf32>
    %105 = tpu.matmul %104, %5, %cst_43 {dimension_numbers = #tpu.dot_dimension_numbers<[1], [0], [0], [1], [0, 0, 1, 1], [], []>} : vector<64x32xf32>, vector<32x128xf32>, vector<64x128xf32> -> vector<64x128xf32>
    %106 = vector.broadcast %6 : vector<1x128xf32> to vector<64x128xf32>
    %107 = arith.addf %105, %106 : vector<64x128xf32>
    %cst_44 = arith.constant dense<0xFF800000> : vector<64xf32>
    %108 = vector.multi_reduction <maximumf>, %107, %cst_44 [1] : vector<64x128xf32> to vector<64xf32>
    %109 = vector.shape_cast %108 : vector<64xf32> to vector<64x1xf32>
    %110 = vector.broadcast %109 : vector<64x1xf32> to vector<64x128xf32>
    %111 = arith.subf %107, %110 : vector<64x128xf32>
    %112 = math.exp %111 : vector<64x128xf32>
    %cst_45 = arith.constant dense<0.000000e+00> : vector<64xf32>
    %113 = vector.multi_reduction <add>, %112, %cst_45 [1] : vector<64x128xf32> to vector<64xf32>
    %114 = vector.shape_cast %113 : vector<64xf32> to vector<64x1xf32>
    %115 = math.log %114 : vector<64x1xf32>
    %116 = vector.broadcast %115 : vector<64x1xf32> to vector<64x128xf32>
    %117 = arith.subf %111, %116 : vector<64x128xf32>
    %c0_46 = arith.constant 0 : index
    %c0_47 = arith.constant 0 : index
    %118 = vector.load %arg3[%c0_46, %c0_47] : memref<64x128xf32, #tpu.memory_space<vmem>>, vector<64x128xf32>
    tpu.vector_store %arg3[%c0_46, %c0_47], %117 {strides = array<i32>} : memref<64x128xf32, #tpu.memory_space<vmem>>, vector<64x128xf32>,
    return
  }
}

</mosaic_0001>

<llo_original>
// kernel: forward.1
$region0: #{forward.1}
  #allocation0 [shape = 'u32[]', space=smem, size = 0x4, offset = 0x4, fixed_abs, tag = 'smem constant byte address 0x4 - core index']
  #allocation1 [shape = 'u32[144,128]{1,0:T(1,128)}', space=vmem, size = 0x12000, scoped, tag = 'internal scratch']
  #allocation2 [shape = 'f32[64,32]{1,0:T(8,128)}', space=vmem, size = 0x8000, scoped, tag = 'scratch operand']
  %s0 = inlined_call_operand.vmem [shape: s32[64,1], index: 0, kind: input, shape index: {}]
  %s1 = inlined_call_operand.vmem [shape: f32[224,32], index: 1, kind: input, shape index: {}]
  %s2 = inlined_call_operand.vmem [shape: f32[40,128], index: 2, kind: input, shape index: {}]
  %s3 = inlined_call_operand.vmem [shape: f32[64,128], index: 3, kind: output, shape index: {}]
  %s4 = sld [smem:[#allocation0]]
  $region22: #{forward.1} parent=0
    _
  %s6 = ssub.s32 1, %s4
  %s7 = scalar_select 0, %s6, %s4
  // Predicated region
  $region2: #{forward.1} parent=0 // pred_check
    _
  $region3: #{forward.1} parent=0 // pred_check_branch
    %9 = sbr.rel (0) target = $region5
  $region4: #{forward.1} parent=0 // pred_region
    _
  $region5: #{forward.1} parent=0 // pred_fallthru
    _
  // Predicated region
  $region6: #{forward.1} parent=0 // pred_check
    _
  $region7: #{forward.1} parent=0 // pred_check_branch
    %11 = sbr.rel (0) target = $region9
  $region8: #{forward.1} parent=0 // pred_region
    _
  $region9: #{forward.1} parent=0 // pred_fallthru
    _
  // Predicated region
  $region10: #{forward.1} parent=0 // pred_check
    _
  $region11: #{forward.1} parent=0 // pred_check_branch
    %13 = sbr.rel (0) target = $region13
  $region12: #{forward.1} parent=0 // pred_region
    _
  $region13: #{forward.1} parent=0 // pred_fallthru
    _
  %v14 = vld [vmem:[%s1] sm:$0xff]
  %v15 = vld [vmem:[%s1 + $0x8] sm:$0xff]
  %v16 = vld [vmem:[%s1 + $0x10] sm:$0xff]
  %v17 = vld [vmem:[%s1 + $0x18] sm:$0xff]
  %v18 = vld [vmem:[%s1 + $0x20] sm:$0xff]
  %v19 = vld [vmem:[%s1 + $0x28] sm:$0xff]
  %v20 = vld [vmem:[%s1 + $0x30] sm:$0xff]
  %v21 = vld [vmem:[%s1 + $0x38] sm:$0xff]
  %v22 = vld [vmem:[%s1 + $0x40] sm:$0xff]
  %v23 = vld [vmem:[%s1 + $0x48] sm:$0xff]
  %v24 = vld [vmem:[%s1 + $0x50] sm:$0xff]
  %v25 = vld [vmem:[%s1 + $0x58] sm:$0xff]
  %v26 = vld [vmem:[%s1 + $0x60] sm:$0xff]
  %v27 = vld [vmem:[%s1 + $0x68] sm:$0xff]
  %v28 = vld [vmem:[%s1 + $0x70] sm:$0xff]
  %v29 = vld [vmem:[%s1 + $0x78] sm:$0xff]
  %v30 = vld [vmem:[%s1 + $0x80] sm:$0xff]
  %v31 = vld [vmem:[%s1 + $0x88] sm:$0xff]
  %v32 = vld [vmem:[%s1 + $0x90] sm:$0xff]
  %v33 = vld [vmem:[%s1 + $0x98] sm:$0xff]
  %v34 = vld [vmem:[%s1 + $0xa0] sm:$0xff]
  %v35 = vld [vmem:[%s1 + $0xa8] sm:$0xff]
  %v36 = vld [vmem:[%s1 + $0xb0] sm:$0xff]
  %v37 = vld [vmem:[%s1 + $0xb8] sm:$0xff]
  %v38 = vld [vmem:[%s1 + $0xc0] sm:$0xff]
  %v39 = vld [vmem:[%s1 + $0xc8] sm:$0xff]
  %v40 = vld [vmem:[%s1 + $0xd0] sm:$0xff]
  %v41 = vld [vmem:[%s1 + $0xd8] sm:$0xff]
  %v42 = vld [vmem:[%s2] sm:$0xff]
  %v43 = vld [vmem:[%s2 + $0x8] sm:$0xff]
  %v44 = vld [vmem:[%s2 + $0x10] sm:$0xff]
  %v45 = vld [vmem:[%s2 + $0x18] sm:$0xff]
  %v46 = vld [vmem:[%s2 + $0x20] sm:$0x1]
  %v47 = vld [vmem:[%s2 + $0x21] sm:$0x1]
  %v48 = vld [vmem:[%s2 + $0x22] sm:$0x1]
  %v49 = vld [vmem:[%s2 + $0x23] sm:$0x1]
  %v50 = vld [vmem:[%s0] sm:$0xff]
  %v51 = vld [vmem:[%s0 + $0x8] sm:$0xff]
  %v52 = vld [vmem:[%s0 + $0x10] sm:$0xff]
  %v53 = vld [vmem:[%s0 + $0x18] sm:$0xff]
  %v54 = vld [vmem:[%s0 + $0x20] sm:$0xff]
  %v55 = vld [vmem:[%s0 + $0x28] sm:$0xff]
  %v56 = vld [vmem:[%s0 + $0x30] sm:$0xff]
  %v57 = vld [vmem:[%s0 + $0x38] sm:$0xff]
  %v58 = vlaneseq
  %v59 = vand.u32 %v58, 127
  %60 = vset.pattern.permute.xlu0 0
  %61 = vperm.xlu0 %60, %v50
  %v62 = vpop.permute.xlu0 %61
  %63 = vset.pattern.permute.xlu0 0
  %64 = vperm.xlu0 %63, %v51
  %v65 = vpop.permute.xlu0 %64
  %66 = vset.pattern.permute.xlu0 0
  %67 = vperm.xlu0 %66, %v52
  %v68 = vpop.permute.xlu0 %67
  %69 = vset.pattern.permute.xlu0 0
  %70 = vperm.xlu0 %69, %v53
  %v71 = vpop.permute.xlu0 %70
  %72 = vset.pattern.permute.xlu0 0
  %73 = vperm.xlu0 %72, %v54
  %v74 = vpop.permute.xlu0 %73
  %75 = vset.pattern.permute.xlu0 0
  %76 = vperm.xlu0 %75, %v55
  %v77 = vpop.permute.xlu0 %76
  %78 = vset.pattern.permute.xlu0 0
  %79 = vperm.xlu0 %78, %v56
  %v80 = vpop.permute.xlu0 %79
  %81 = vset.pattern.permute.xlu0 0
  %82 = vperm.xlu0 %81, %v57
  %v83 = vpop.permute.xlu0 %82
  %vm84 = vcmp.eq.s32.totalorder %v59, %v62
  %vm85 = vcmp.eq.s32.totalorder %v59, %v65
  %vm86 = vcmp.eq.s32.totalorder %v59, %v68
  %vm87 = vcmp.eq.s32.totalorder %v59, %v71
  %vm88 = vcmp.eq.s32.totalorder %v59, %v74
  %vm89 = vcmp.eq.s32.totalorder %v59, %v77
  %vm90 = vcmp.eq.s32.totalorder %v59, %v80
  %vm91 = vcmp.eq.s32.totalorder %v59, %v83
  %v92 = vsel %vm84, 1, 0
  %v93 = vsel %vm85, 1, 0
  %v94 = vsel %vm86, 1, 0
  %v95 = vsel %vm87, 1, 0
  %v96 = vsel %vm88, 1, 0
  %v97 = vsel %vm89, 1, 0
  %v98 = vsel %vm90, 1, 0
  %v99 = vsel %vm91, 1, 0
  %v100 = vcvt.s32.f32 %v92
  %v101 = vcvt.s32.f32 %v93
  %v102 = vcvt.s32.f32 %v94
  %v103 = vcvt.s32.f32 %v95
  %v104 = vcvt.s32.f32 %v96
  %v105 = vcvt.s32.f32 %v97
  %v106 = vcvt.s32.f32 %v98
  %v107 = vcvt.s32.f32 %v99
  %vm108 = vcmask 523264
  %v110 = vsel %vm108, %v100, 0
  %v113 = vsel %vm108, %v101, 0
  %v116 = vsel %vm108, %v102, 0
  %v119 = vsel %vm108, %v103, 0
  %v122 = vsel %vm108, %v104, 0
  %v125 = vsel %vm108, %v105, 0
  %v128 = vsel %vm108, %v106, 0
  %v131 = vsel %vm108, %v107, 0
  %133 = vmatprep.subr.mxu0 0.0
  %134 = vmatpush1.msra.mxu0 %v14
  %135 = vmatprep.subr.mxu0 0.0
  %136 = vmatpush1.msra.mxu0 %v15
  %137 = vmatprep.subr.mxu0 0.0
  %138 = vmatpush1.msra.mxu0 %v16
  %139 = vmatprep.subr.mxu0 0.0
  %140 = vmatpush1.msra.mxu0 %v17
  %141 = vmatprep.subr.mxu0 0.0
  %142 = vmatpush1.msra.mxu0 %v18
  %143 = vmatprep.subr.mxu0 0.0
  %144 = vmatpush1.msra.mxu0 %v19
  %145 = vmatprep.subr.mxu0 0.0
  %146 = vmatpush1.msra.mxu0 %v20
  %147 = vmatprep.subr.mxu0 0.0
  %148 = vmatpush1.msra.mxu0 %v21
  %149 = vmatprep.subr.mxu0 0.0
  %150 = vmatpush1.msra.mxu0 0.0
  %151 = vmatprep.subr.mxu0 0.0
  %152 = vmatpush1.msra.mxu0 0.0
  %153 = vmatprep.subr.mxu0 0.0
  %154 = vmatpush1.msra.mxu0 0.0
  %155 = vmatprep.subr.mxu0 0.0
  %156 = vmatpush1.msra.mxu0 0.0
  %157 = vmatprep.subr.mxu0 0.0
  %158 = vmatpush1.msra.mxu0 0.0
  %159 = vmatprep.subr.mxu0 0.0
  %160 = vmatpush1.msra.mxu0 0.0
  %161 = vmatprep.subr.mxu0 0.0
  %162 = vmatpush1.msra.mxu0 0.0
  %163 = vmatprep.subr.mxu0 0.0
  %164 = vmatpush1.msra.mxu0 0.0
  %165 = vmatprep.subr.mxu0 0.0
  %166 = vmatpush1.msra.mxu0 0.0
  %167 = vmatprep.subr.mxu0 0.0
  %168 = vmatpush1.msra.mxu0 0.0
  %169 = vmatprep.subr.mxu0 0.0
  %170 = vmatpush1.msra.mxu0 0.0
  %171 = vmatprep.subr.mxu0 0.0
  %172 = vmatpush1.msra.mxu0 0.0
  %173 = vmatprep.subr.mxu0 0.0
  %174 = vmatpush1.msra.mxu0 0.0
  %175 = vmatprep.subr.mxu0 0.0
  %176 = vmatpush1.msra.mxu0 0.0
  %177 = vmatprep.subr.mxu0 0.0
  %178 = vmatpush1.msra.mxu0 0.0
  %179 = vmatprep.subr.mxu0 0.0
  %180 = vmatpush1.msra.mxu0 0.0
  %181 = vmatprep.subr.mxu0 0.0
  %182 = vmatpush1.msra.mxu0 0.0
  %183 = vmatprep.subr.mxu0 0.0
  %184 = vmatpush1.msra.mxu0 0.0
  %185 = vmatprep.subr.mxu0 0.0
  %186 = vmatpush1.msra.mxu0 0.0
  %187 = vmatprep.subr.mxu0 0.0
  %188 = vmatpush1.msra.mxu0 0.0
  %189 = vmatprep.subr.mxu0 0.0
  %190 = vmatpush1.msra.mxu0 0.0
  %191 = vmatprep.subr.mxu0 0.0
  %192 = vmatpush1.msra.mxu0 0.0
  %193 = vmatprep.subr.mxu0 0.0
  %194 = vmatpush1.msra.mxu0 0.0
  %195 = vmatprep.subr.mxu0 0.0
  %196 = vmatpush1.msra.mxu0 0.0
  %197 = vmatprep.mubr.f32.mxu0 0.0
  %198 = vmatmul.mubr.f32.gmra.mrb[0].mxu0 %v110
  %v199 = vpop.f32.mrb[0].mxu0
  %v200 = vadd.f32 0.0, %v199
  %v201 = vpop.f32.mrb[0].mxu0
  %202 = vmatprep.mubr.f32.mxu0 0.0
  %203 = vmatmul.mubr.f32.gmra.mrb[0].mxu0 %v113
  %v204 = vpop.f32.mrb[0].mxu0
  %v205 = vadd.f32 0.0, %v204
  %v206 = vpop.f32.mrb[0].mxu0
  %207 = vmatprep.mubr.f32.mxu0 0.0
  %208 = vmatmul.mubr.f32.gmra.mrb[0].mxu0 %v116
  %v209 = vpop.f32.mrb[0].mxu0
  %v210 = vadd.f32 0.0, %v209
  %v211 = vpop.f32.mrb[0].mxu0
  %212 = vmatprep.mubr.f32.mxu0 0.0
  %213 = vmatmul.mubr.f32.gmra.mrb[0].mxu0 %v119
  %v214 = vpop.f32.mrb[0].mxu0
  %v215 = vadd.f32 0.0, %v214
  %v216 = vpop.f32.mrb[0].mxu0
  %217 = vmatprep.mubr.f32.mxu0 0.0
  %218 = vmatmul.mubr.f32.gmra.mrb[0].mxu0 %v122
  %v219 = vpop.f32.mrb[0].mxu0
  %v220 = vadd.f32 0.0, %v219
  %v221 = vpop.f32.mrb[0].mxu0
  %222 = vmatprep.mubr.f32.mxu0 0.0
  %223 = vmatmul.mubr.f32.gmra.mrb[0].mxu0 %v125
  %v224 = vpop.f32.mrb[0].mxu0
  %v225 = vadd.f32 0.0, %v224
  %v226 = vpop.f32.mrb[0].mxu0
  %227 = vmatprep.mubr.f32.mxu0 0.0
  %228 = vmatmul.mubr.f32.gmra.mrb[0].mxu0 %v128
  %v229 = vpop.f32.mrb[0].mxu0
  %v230 = vadd.f32 0.0, %v229
  %v231 = vpop.f32.mrb[0].mxu0
  %232 = vmatprep.mubr.f32.mxu0 0.0
  %233 = vmatmul.mubr.f32.gmra.mrb[0].mxu0 %v131
  %v234 = vpop.f32.mrb[0].mxu0
  %v235 = vadd.f32 0.0, %v234
  %v236 = vpop.f32.mrb[0].mxu0
  %237 = vdwg.mxu0
  %v238 = vtanh.pop %v200
  %vm239 = vcmask 261120
  %v241 = vsel %vm239, %v238, 0
  %243 = vmatprep.subr.mxu0 0.0
  %244 = vmatpush1.msra.mxu0 %v22
  %245 = vmatprep.subr.mxu0 0.0
  %246 = vmatpush1.msra.mxu0 %v23
  %247 = vmatprep.subr.mxu0 0.0
  %248 = vmatpush1.msra.mxu0 %v24
  %249 = vmatprep.subr.mxu0 0.0
  %250 = vmatpush1.msra.mxu0 %v25
  %251 = vmatprep.subr.mxu0 0.0
  %252 = vmatpush1.msra.mxu0 0.0
  %253 = vmatprep.subr.mxu0 0.0
  %254 = vmatpush1.msra.mxu0 0.0
  %255 = vmatprep.subr.mxu0 0.0
  %256 = vmatpush1.msra.mxu0 0.0
  %257 = vmatprep.subr.mxu0 0.0
  %258 = vmatpush1.msra.mxu0 0.0
  %259 = vmatprep.subr.mxu0 0.0
  %260 = vmatpush1.msra.mxu0 0.0
  %261 = vmatprep.subr.mxu0 0.0
  %262 = vmatpush1.msra.mxu0 0.0
  %263 = vmatprep.subr.mxu0 0.0
  %264 = vmatpush1.msra.mxu0 0.0
  %265 = vmatprep.subr.mxu0 0.0
  %266 = vmatpush1.msra.mxu0 0.0
  %267 = vmatprep.subr.mxu0 0.0
  %268 = vmatpush1.msra.mxu0 0.0
  %269 = vmatprep.subr.mxu0 0.0
  %270 = vmatpush1.msra.mxu0 0.0
  %271 = vmatprep.subr.mxu0 0.0
  %272 = vmatpush1.msra.mxu0 0.0
  %273 = vmatprep.subr.mxu0 0.0
  %274 = vmatpush1.msra.mxu0 0.0
  %275 = vmatprep.subr.mxu0 0.0
  %276 = vmatpush1.msra.mxu0 0.0
  %277 = vmatprep.subr.mxu0 0.0
  %278 = vmatpush1.msra.mxu0 0.0
  %279 = vmatprep.subr.mxu0 0.0
  %280 = vmatpush1.msra.mxu0 0.0
  %281 = vmatprep.subr.mxu0 0.0
  %282 = vmatpush1.msra.mxu0 0.0
  %283 = vmatprep.subr.mxu0 0.0
  %284 = vmatpush1.msra.mxu0 0.0
  %285 = vmatprep.subr.mxu0 0.0
  %286 = vmatpush1.msra.mxu0 0.0
  %287 = vmatprep.subr.mxu0 0.0
  %288 = vmatpush1.msra.mxu0 0.0
  %289 = vmatprep.subr.mxu0 0.0
  %290 = vmatpush1.msra.mxu0 0.0
  %291 = vmatprep.subr.mxu0 0.0
  %292 = vmatpush1.msra.mxu0 0.0
  %293 = vmatprep.subr.mxu0 0.0
  %294 = vmatpush1.msra.mxu0 0.0
  %295 = vmatprep.subr.mxu0 0.0
  %296 = vmatpush1.msra.mxu0 0.0
  %297 = vmatprep.subr.mxu0 0.0
  %298 = vmatpush1.msra.mxu0 0.0
  %299 = vmatprep.subr.mxu0 0.0
  %300 = vmatpush1.msra.mxu0 0.0
  %301 = vmatprep.subr.mxu0 0.0
  %302 = vmatpush1.msra.mxu0 0.0
  %303 = vmatprep.subr.mxu0 0.0
  %304 = vmatpush1.msra.mxu0 0.0
  %305 = vmatprep.subr.mxu0 0.0
  %306 = vmatpush1.msra.mxu0 0.0
  %307 = vmatprep.mubr.f32.mxu0 0.0
  %308 = vmatmul.mubr.f32.gmra.mrb[0].mxu0 %v241
  %v309 = vpop.f32.mrb[0].mxu0
  %v310 = vadd.f32 0.0, %v309
  %v311 = vpop.f32.mrb[0].mxu0
  %312 = vdwg.mxu0
  %v313 = vadd.f32 %v205, %v310
  %v314 = vtanh.pop %v313
  %v315 = vsel %vm239, %v238, 0.0
  %v316 = vlaneseq
  %v317 = vshrl.u32 %v316, 7
  %v318 = vsub.s32 0, %v317
  %v319 = vrot.slane %v47, %v318
  %v321 = vsel %vm108, %v315, 0
  %323 = vmatprep.subr.mxu0 0.0
  %324 = vmatpush1.msra.mxu0 %v26
  %325 = vmatprep.subr.mxu0 0.0
  %326 = vmatpush1.msra.mxu0 %v27
  %327 = vmatprep.subr.mxu0 0.0
  %328 = vmatpush1.msra.mxu0 %v28
  %329 = vmatprep.subr.mxu0 0.0
  %330 = vmatpush1.msra.mxu0 %v29
  %331 = vmatprep.subr.mxu0 0.0
  %332 = vmatpush1.msra.mxu0 %v30
  %333 = vmatprep.subr.mxu0 0.0
  %334 = vmatpush1.msra.mxu0 %v31
  %335 = vmatprep.subr.mxu0 0.0
  %336 = vmatpush1.msra.mxu0 %v32
  %337 = vmatprep.subr.mxu0 0.0
  %338 = vmatpush1.msra.mxu0 %v33
  %339 = vmatprep.subr.mxu0 0.0
  %340 = vmatpush1.msra.mxu0 0.0
  %341 = vmatprep.subr.mxu0 0.0
  %342 = vmatpush1.msra.mxu0 0.0
  %343 = vmatprep.subr.mxu0 0.0
  %344 = vmatpush1.msra.mxu0 0.0
  %345 = vmatprep.subr.mxu0 0.0
  %346 = vmatpush1.msra.mxu0 0.0
  %347 = vmatprep.subr.mxu0 0.0
  %348 = vmatpush1.msra.mxu0 0.0
  %349 = vmatprep.subr.mxu0 0.0
  %350 = vmatpush1.msra.mxu0 0.0
  %351 = vmatprep.subr.mxu0 0.0
  %352 = vmatpush1.msra.mxu0 0.0
  %353 = vmatprep.subr.mxu0 0.0
  %354 = vmatpush1.msra.mxu0 0.0
  %355 = vmatprep.subr.mxu0 0.0
  %356 = vmatpush1.msra.mxu0 0.0
  %357 = vmatprep.subr.mxu0 0.0
  %358 = vmatpush1.msra.mxu0 0.0
  %359 = vmatprep.subr.mxu0 0.0
  %360 = vmatpush1.msra.mxu0 0.0
  %361 = vmatprep.subr.mxu0 0.0
  %362 = vmatpush1.msra.mxu0 0.0
  %363 = vmatprep.subr.mxu0 0.0
  %364 = vmatpush1.msra.mxu0 0.0
  %365 = vmatprep.subr.mxu0 0.0
  %366 = vmatpush1.msra.mxu0 0.0
  %367 = vmatprep.subr.mxu0 0.0
  %368 = vmatpush1.msra.mxu0 0.0
  %369 = vmatprep.subr.mxu0 0.0
  %370 = vmatpush1.msra.mxu0 0.0
  %371 = vmatprep.subr.mxu0 0.0
  %372 = vmatpush1.msra.mxu0 0.0
  %373 = vmatprep.subr.mxu0 0.0
  %374 = vmatpush1.msra.mxu0 0.0
  %375 = vmatprep.subr.mxu0 0.0
  %376 = vmatpush1.msra.mxu0 0.0
  %377 = vmatprep.subr.mxu0 0.0
  %378 = vmatpush1.msra.mxu0 0.0
  %379 = vmatprep.subr.mxu0 0.0
  %380 = vmatpush1.msra.mxu0 0.0
  %381 = vmatprep.subr.mxu0 0.0
  %382 = vmatpush1.msra.mxu0 0.0
  %383 = vmatprep.subr.mxu0 0.0
  %384 = vmatpush1.msra.mxu0 0.0
  %385 = vmatprep.subr.mxu0 0.0
  %386 = vmatpush1.msra.mxu0 0.0
  %387 = vmatprep.mubr.f32.mxu0 0.0
  %388 = vmatmul.mubr.f32.gmra.mrb[0].mxu0 %v321
  %v389 = vpop.f32.mrb[0].mxu0
  %v390 = vadd.f32 %v319, %v389
  %v391 = vpop.f32.mrb[0].mxu0
  %392 = vdwg.mxu0
  %v393 = vtanh.pop %v390
  %394 = vst.msk [vmem:[#allocation2] sm:$0xff] %vm239, %v393
  %v396 = vsel %vm239, %v314, 0
  %398 = vmatprep.subr.mxu0 0.0
  %399 = vmatpush1.msra.mxu0 %v22
  %400 = vmatprep.subr.mxu0 0.0
  %401 = vmatpush1.msra.mxu0 %v23
  %402 = vmatprep.subr.mxu0 0.0
  %403 = vmatpush1.msra.mxu0 %v24
  %404 = vmatprep.subr.mxu0 0.0
  %405 = vmatpush1.msra.mxu0 %v25
  %406 = vmatprep.subr.mxu0 0.0
  %407 = vmatpush1.msra.mxu0 0.0
  %408 = vmatprep.subr.mxu0 0.0
  %409 = vmatpush1.msra.mxu0 0.0
  %410 = vmatprep.subr.mxu0 0.0
  %411 = vmatpush1.msra.mxu0 0.0
  %412 = vmatprep.subr.mxu0 0.0
  %413 = vmatpush1.msra.mxu0 0.0
  %414 = vmatprep.subr.mxu0 0.0
  %415 = vmatpush1.msra.mxu0 0.0
  %416 = vmatprep.subr.mxu0 0.0
  %417 = vmatpush1.msra.mxu0 0.0
  %418 = vmatprep.subr.mxu0 0.0
  %419 = vmatpush1.msra.mxu0 0.0
  %420 = vmatprep.subr.mxu0 0.0
  %421 = vmatpush1.msra.mxu0 0.0
  %422 = vmatprep.subr.mxu0 0.0
  %423 = vmatpush1.msra.mxu0 0.0
  %424 = vmatprep.subr.mxu0 0.0
  %425 = vmatpush1.msra.mxu0 0.0
  %426 = vmatprep.subr.mxu0 0.0
  %427 = vmatpush1.msra.mxu0 0.0
  %428 = vmatprep.subr.mxu0 0.0
  %429 = vmatpush1.msra.mxu0 0.0
  %430 = vmatprep.subr.mxu0 0.0
  %431 = vmatpush1.msra.mxu0 0.0
  %432 = vmatprep.subr.mxu0 0.0
  %433 = vmatpush1.msra.mxu0 0.0
  %434 = vmatprep.subr.mxu0 0.0
  %435 = vmatpush1.msra.mxu0 0.0
  %436 = vmatprep.subr.mxu0 0.0
  %437 = vmatpush1.msra.mxu0 0.0
  %438 = vmatprep.subr.mxu0 0.0
  %439 = vmatpush1.msra.mxu0 0.0
  %440 = vmatprep.subr.mxu0 0.0
  %441 = vmatpush1.msra.mxu0 0.0
  %442 = vmatprep.subr.mxu0 0.0
  %443 = vmatpush1.msra.mxu0 0.0
  %444 = vmatprep.subr.mxu0 0.0
  %445 = vmatpush1.msra.mxu0 0.0
  %446 = vmatprep.subr.mxu0 0.0
  %447 = vmatpush1.msra.mxu0 0.0
  %448 = vmatprep.subr.mxu0 0.0
  %449 = vmatpush1.msra.mxu0 0.0
  %450 = vmatprep.subr.mxu0 0.0
  %451 = vmatpush1.msra.mxu0 0.0
  %452 = vmatprep.subr.mxu0 0.0
  %453 = vmatpush1.msra.mxu0 0.0
  %454 = vmatprep.subr.mxu0 0.0
  %455 = vmatpush1.msra.mxu0 0.0
  %456 = vmatprep.subr.mxu0 0.0
  %457 = vmatpush1.msra.mxu0 0.0
  %458 = vmatprep.subr.mxu0 0.0
  %459 = vmatpush1.msra.mxu0 0.0
  %460 = vmatprep.subr.mxu0 0.0
  %461 = vmatpush1.msra.mxu0 0.0
  %462 = vmatprep.mubr.f32.mxu0 0.0
  %463 = vmatmul.mubr.f32.gmra.mrb[0].mxu0 %v396
  %v464 = vpop.f32.mrb[0].mxu0
  %v465 = vadd.f32 0.0, %v464
  %v466 = vpop.f32.mrb[0].mxu0
  %467 = vdwg.mxu0
  %v468 = vadd.f32 %v210, %v465
  %v469 = vtanh.pop %v468
  %471 = vrot.lane.b32.xlu0 %v393, 32
  %v472 = vpop.permute.xlu0 %471
  %v474 = vsel %vm239, %v314, %v472
  %v476 = vsel %vm108, %v474, 0
  %478 = vmatprep.subr.mxu0 0.0
  %479 = vmatpush1.msra.mxu0 %v26
  %480 = vmatprep.subr.mxu0 0.0
  %481 = vmatpush1.msra.mxu0 %v27
  %482 = vmatprep.subr.mxu0 0.0
  %483 = vmatpush1.msra.mxu0 %v28
  %484 = vmatprep.subr.mxu0 0.0
  %485 = vmatpush1.msra.mxu0 %v29
  %486 = vmatprep.subr.mxu0 0.0
  %487 = vmatpush1.msra.mxu0 %v30
  %488 = vmatprep.subr.mxu0 0.0
  %489 = vmatpush1.msra.mxu0 %v31
  %490 = vmatprep.subr.mxu0 0.0
  %491 = vmatpush1.msra.mxu0 %v32
  %492 = vmatprep.subr.mxu0 0.0
  %493 = vmatpush1.msra.mxu0 %v33
  %494 = vmatprep.subr.mxu0 0.0
  %495 = vmatpush1.msra.mxu0 0.0
  %496 = vmatprep.subr.mxu0 0.0
  %497 = vmatpush1.msra.mxu0 0.0
  %498 = vmatprep.subr.mxu0 0.0
  %499 = vmatpush1.msra.mxu0 0.0
  %500 = vmatprep.subr.mxu0 0.0
  %501 = vmatpush1.msra.mxu0 0.0
  %502 = vmatprep.subr.mxu0 0.0
  %503 = vmatpush1.msra.mxu0 0.0
  %504 = vmatprep.subr.mxu0 0.0
  %505 = vmatpush1.msra.mxu0 0.0
  %506 = vmatprep.subr.mxu0 0.0
  %507 = vmatpush1.msra.mxu0 0.0
  %508 = vmatprep.subr.mxu0 0.0
  %509 = vmatpush1.msra.mxu0 0.0
  %510 = vmatprep.subr.mxu0 0.0
  %511 = vmatpush1.msra.mxu0 0.0
  %512 = vmatprep.subr.mxu0 0.0
  %513 = vmatpush1.msra.mxu0 0.0
  %514 = vmatprep.subr.mxu0 0.0
  %515 = vmatpush1.msra.mxu0 0.0
  %516 = vmatprep.subr.mxu0 0.0
  %517 = vmatpush1.msra.mxu0 0.0
  %518 = vmatprep.subr.mxu0 0.0
  %519 = vmatpush1.msra.mxu0 0.0
  %520 = vmatprep.subr.mxu0 0.0
  %521 = vmatpush1.msra.mxu0 0.0
  %522 = vmatprep.subr.mxu0 0.0
  %523 = vmatpush1.msra.mxu0 0.0
  %524 = vmatprep.subr.mxu0 0.0
  %525 = vmatpush1.msra.mxu0 0.0
  %526 = vmatprep.subr.mxu0 0.0
  %527 = vmatpush1.msra.mxu0 0.0
  %528 = vmatprep.subr.mxu0 0.0
  %529 = vmatpush1.msra.mxu0 0.0
  %530 = vmatprep.subr.mxu0 0.0
  %531 = vmatpush1.msra.mxu0 0.0
  %532 = vmatprep.subr.mxu0 0.0
  %533 = vmatpush1.msra.mxu0 0.0
  %534 = vmatprep.subr.mxu0 0.0
  %535 = vmatpush1.msra.mxu0 0.0
  %536 = vmatprep.subr.mxu0 0.0
  %537 = vmatpush1.msra.mxu0 0.0
  %538 = vmatprep.subr.mxu0 0.0
  %539 = vmatpush1.msra.mxu0 0.0
  %540 = vmatprep.subr.mxu0 0.0
  %541 = vmatpush1.msra.mxu0 0.0
  %542 = vmatprep.mubr.f32.mxu0 0.0
  %543 = vmatmul.mubr.f32.gmra.mrb[0].mxu0 %v476
  %v544 = vpop.f32.mrb[0].mxu0
  %v545 = vadd.f32 %v319, %v544
  %v546 = vpop.f32.mrb[0].mxu0
  %547 = vdwg.mxu0
  %v548 = vtanh.pop %v545
  %549 = vst.msk [vmem:[#allocation2 + $0x8] sm:$0xff] %vm239, %v548
  %v551 = vsel %vm239, %v469, 0
  %553 = vmatprep.subr.mxu0 0.0
  %554 = vmatpush1.msra.mxu0 %v22
  %555 = vmatprep.subr.mxu0 0.0
  %556 = vmatpush1.msra.mxu0 %v23
  %557 = vmatprep.subr.mxu0 0.0
  %558 = vmatpush1.msra.mxu0 %v24
  %559 = vmatprep.subr.mxu0 0.0
  %560 = vmatpush1.msra.mxu0 %v25
  %561 = vmatprep.subr.mxu0 0.0
  %562 = vmatpush1.msra.mxu0 0.0
  %563 = vmatprep.subr.mxu0 0.0
  %564 = vmatpush1.msra.mxu0 0.0
  %565 = vmatprep.subr.mxu0 0.0
  %566 = vmatpush1.msra.mxu0 0.0
  %567 = vmatprep.subr.mxu0 0.0
  %568 = vmatpush1.msra.mxu0 0.0
  %569 = vmatprep.subr.mxu0 0.0
  %570 = vmatpush1.msra.mxu0 0.0
  %571 = vmatprep.subr.mxu0 0.0
  %572 = vmatpush1.msra.mxu0 0.0
  %573 = vmatprep.subr.mxu0 0.0
  %574 = vmatpush1.msra.mxu0 0.0
  %575 = vmatprep.subr.mxu0 0.0
  %576 = vmatpush1.msra.mxu0 0.0
  %577 = vmatprep.subr.mxu0 0.0
  %578 = vmatpush1.msra.mxu0 0.0
  %579 = vmatprep.subr.mxu0 0.0
  %580 = vmatpush1.msra.mxu0 0.0
  %581 = vmatprep.subr.mxu0 0.0
  %582 = vmatpush1.msra.mxu0 0.0
  %583 = vmatprep.subr.mxu0 0.0
  %584 = vmatpush1.msra.mxu0 0.0
  %585 = vmatprep.subr.mxu0 0.0
  %586 = vmatpush1.msra.mxu0 0.0
  %587 = vmatprep.subr.mxu0 0.0
  %588 = vmatpush1.msra.mxu0 0.0
  %589 = vmatprep.subr.mxu0 0.0
  %590 = vmatpush1.msra.mxu0 0.0
  %591 = vmatprep.subr.mxu0 0.0
  %592 = vmatpush1.msra.mxu0 0.0
  %593 = vmatprep.subr.mxu0 0.0
  %594 = vmatpush1.msra.mxu0 0.0
  %595 = vmatprep.subr.mxu0 0.0
  %596 = vmatpush1.msra.mxu0 0.0
  %597 = vmatprep.subr.mxu0 0.0
  %598 = vmatpush1.msra.mxu0 0.0
  %599 = vmatprep.subr.mxu0 0.0
  %600 = vmatpush1.msra.mxu0 0.0
  %601 = vmatprep.subr.mxu0 0.0
  %602 = vmatpush1.msra.mxu0 0.0
  %603 = vmatprep.subr.mxu0 0.0
  %604 = vmatpush1.msra.mxu0 0.0
  %605 = vmatprep.subr.mxu0 0.0
  %606 = vmatpush1.msra.mxu0 0.0
  %607 = vmatprep.subr.mxu0 0.0
  %608 = vmatpush1.msra.mxu0 0.0
  %609 = vmatprep.subr.mxu0 0.0
  %610 = vmatpush1.msra.mxu0 0.0
  %611 = vmatprep.subr.mxu0 0.0
  %612 = vmatpush1.msra.mxu0 0.0
  %613 = vmatprep.subr.mxu0 0.0
  %614 = vmatpush1.msra.mxu0 0.0
  %615 = vmatprep.subr.mxu0 0.0
  %616 = vmatpush1.msra.mxu0 0.0
  %617 = vmatprep.mubr.f32.mxu0 0.0
  %618 = vmatmul.mubr.f32.gmra.mrb[0].mxu0 %v551
  %v619 = vpop.f32.mrb[0].mxu0
  %v620 = vadd.f32 0.0, %v619
  %v621 = vpop.f32.mrb[0].mxu0
  %622 = vdwg.mxu0
  %v623 = vadd.f32 %v215, %v620
  %v624 = vtanh.pop %v623
  %626 = vrot.lane.b32.xlu0 %v548, 32
  %v627 = vpop.permute.xlu0 %626
  %v629 = vsel %vm239, %v469, %v627
  %v631 = vsel %vm108, %v629, 0
  %633 = vmatprep.subr.mxu0 0.0
  %634 = vmatpush1.msra.mxu0 %v26
  %635 = vmatprep.subr.mxu0 0.0
  %636 = vmatpush1.msra.mxu0 %v27
  %637 = vmatprep.subr.mxu0 0.0
  %638 = vmatpush1.msra.mxu0 %v28
  %639 = vmatprep.subr.mxu0 0.0
  %640 = vmatpush1.msra.mxu0 %v29
  %641 = vmatprep.subr.mxu0 0.0
  %642 = vmatpush1.msra.mxu0 %v30
  %643 = vmatprep.subr.mxu0 0.0
  %644 = vmatpush1.msra.mxu0 %v31
  %645 = vmatprep.subr.mxu0 0.0
  %646 = vmatpush1.msra.mxu0 %v32
  %647 = vmatprep.subr.mxu0 0.0
  %648 = vmatpush1.msra.mxu0 %v33
  %649 = vmatprep.subr.mxu0 0.0
  %650 = vmatpush1.msra.mxu0 0.0
  %651 = vmatprep.subr.mxu0 0.0
  %652 = vmatpush1.msra.mxu0 0.0
  %653 = vmatprep.subr.mxu0 0.0
  %654 = vmatpush1.msra.mxu0 0.0
  %655 = vmatprep.subr.mxu0 0.0
  %656 = vmatpush1.msra.mxu0 0.0
  %657 = vmatprep.subr.mxu0 0.0
  %658 = vmatpush1.msra.mxu0 0.0
  %659 = vmatprep.subr.mxu0 0.0
  %660 = vmatpush1.msra.mxu0 0.0
  %661 = vmatprep.subr.mxu0 0.0
  %662 = vmatpush1.msra.mxu0 0.0
  %663 = vmatprep.subr.mxu0 0.0
  %664 = vmatpush1.msra.mxu0 0.0
  %665 = vmatprep.subr.mxu0 0.0
  %666 = vmatpush1.msra.mxu0 0.0
  %667 = vmatprep.subr.mxu0 0.0
  %668 = vmatpush1.msra.mxu0 0.0
  %669 = vmatprep.subr.mxu0 0.0
  %670 = vmatpush1.msra.mxu0 0.0
  %671 = vmatprep.subr.mxu0 0.0
  %672 = vmatpush1.msra.mxu0 0.0
  %673 = vmatprep.subr.mxu0 0.0
  %674 = vmatpush1.msra.mxu0 0.0
  %675 = vmatprep.subr.mxu0 0.0
  %676 = vmatpush1.msra.mxu0 0.0
  %677 = vmatprep.subr.mxu0 0.0
  %678 = vmatpush1.msra.mxu0 0.0
  %679 = vmatprep.subr.mxu0 0.0
  %680 = vmatpush1.msra.mxu0 0.0
  %681 = vmatprep.subr.mxu0 0.0
  %682 = vmatpush1.msra.mxu0 0.0
  %683 = vmatprep.subr.mxu0 0.0
  %684 = vmatpush1.msra.mxu0 0.0
  %685 = vmatprep.subr.mxu0 0.0
  %686 = vmatpush1.msra.mxu0 0.0
  %687 = vmatprep.subr.mxu0 0.0
  %688 = vmatpush1.msra.mxu0 0.0
  %689 = vmatprep.subr.mxu0 0.0
  %690 = vmatpush1.msra.mxu0 0.0
  %691 = vmatprep.subr.mxu0 0.0
  %692 = vmatpush1.msra.mxu0 0.0
  %693 = vmatprep.subr.mxu0 0.0
  %694 = vmatpush1.msra.mxu0 0.0
  %695 = vmatprep.subr.mxu0 0.0
  %696 = vmatpush1.msra.mxu0 0.0
  %697 = vmatprep.mubr.f32.mxu0 0.0
  %698 = vmatmul.mubr.f32.gmra.mrb[0].mxu0 %v631
  %v699 = vpop.f32.mrb[0].mxu0
  %v700 = vadd.f32 %v319, %v699
  %v701 = vpop.f32.mrb[0].mxu0
  %702 = vdwg.mxu0
  %v703 = vtanh.pop %v700
  %704 = vst.msk [vmem:[#allocation2 + $0x10] sm:$0xff] %vm239, %v703
  %v706 = vsel %vm239, %v624, 0
  %708 = vmatprep.subr.mxu0 0.0
  %709 = vmatpush1.msra.mxu0 %v22
  %710 = vmatprep.subr.mxu0 0.0
  %711 = vmatpush1.msra.mxu0 %v23
  %712 = vmatprep.subr.mxu0 0.0
  %713 = vmatpush1.msra.mxu0 %v24
  %714 = vmatprep.subr.mxu0 0.0
  %715 = vmatpush1.msra.mxu0 %v25
  %716 = vmatprep.subr.mxu0 0.0
  %717 = vmatpush1.msra.mxu0 0.0
  %718 = vmatprep.subr.mxu0 0.0
  %719 = vmatpush1.msra.mxu0 0.0
  %720 = vmatprep.subr.mxu0 0.0
  %721 = vmatpush1.msra.mxu0 0.0
  %722 = vmatprep.subr.mxu0 0.0
  %723 = vmatpush1.msra.mxu0 0.0
  %724 = vmatprep.subr.mxu0 0.0
  %725 = vmatpush1.msra.mxu0 0.0
  %726 = vmatprep.subr.mxu0 0.0
  %727 = vmatpush1.msra.mxu0 0.0
  %728 = vmatprep.subr.mxu0 0.0
  %729 = vmatpush1.msra.mxu0 0.0
  %730 = vmatprep.subr.mxu0 0.0
  %731 = vmatpush1.msra.mxu0 0.0
  %732 = vmatprep.subr.mxu0 0.0
  %733 = vmatpush1.msra.mxu0 0.0
  %734 = vmatprep.subr.mxu0 0.0
  %735 = vmatpush1.msra.mxu0 0.0
  %736 = vmatprep.subr.mxu0 0.0
  %737 = vmatpush1.msra.mxu0 0.0
  %738 = vmatprep.subr.mxu0 0.0
  %739 = vmatpush1.msra.mxu0 0.0
  %740 = vmatprep.subr.mxu0 0.0
  %741 = vmatpush1.msra.mxu0 0.0
  %742 = vmatprep.subr.mxu0 0.0
  %743 = vmatpush1.msra.mxu0 0.0
  %744 = vmatprep.subr.mxu0 0.0
  %745 = vmatpush1.msra.mxu0 0.0
  %746 = vmatprep.subr.mxu0 0.0
  %747 = vmatpush1.msra.mxu0 0.0
  %748 = vmatprep.subr.mxu0 0.0
  %749 = vmatpush1.msra.mxu0 0.0
  %750 = vmatprep.subr.mxu0 0.0
  %751 = vmatpush1.msra.mxu0 0.0
  %752 = vmatprep.subr.mxu0 0.0
  %753 = vmatpush1.msra.mxu0 0.0
  %754 = vmatprep.subr.mxu0 0.0
  %755 = vmatpush1.msra.mxu0 0.0
  %756 = vmatprep.subr.mxu0 0.0
  %757 = vmatpush1.msra.mxu0 0.0
  %758 = vmatprep.subr.mxu0 0.0
  %759 = vmatpush1.msra.mxu0 0.0
  %760 = vmatprep.subr.mxu0 0.0
  %761 = vmatpush1.msra.mxu0 0.0
  %762 = vmatprep.subr.mxu0 0.0
  %763 = vmatpush1.msra.mxu0 0.0
  %764 = vmatprep.subr.mxu0 0.0
  %765 = vmatpush1.msra.mxu0 0.0
  %766 = vmatprep.subr.mxu0 0.0
  %767 = vmatpush1.msra.mxu0 0.0
  %768 = vmatprep.subr.mxu0 0.0
  %769 = vmatpush1.msra.mxu0 0.0
  %770 = vmatprep.subr.mxu0 0.0
  %771 = vmatpush1.msra.mxu0 0.0
  %772 = vmatprep.mubr.f32.mxu0 0.0
  %773 = vmatmul.mubr.f32.gmra.mrb[0].mxu0 %v706
  %v774 = vpop.f32.mrb[0].mxu0
  %v775 = vadd.f32 0.0, %v774
  %v776 = vpop.f32.mrb[0].mxu0
  %777 = vdwg.mxu0
  %v778 = vadd.f32 %v220, %v775
  %v779 = vtanh.pop %v778
  %781 = vrot.lane.b32.xlu0 %v703, 32
  %v782 = vpop.permute.xlu0 %781
  %v784 = vsel %vm239, %v624, %v782
  %v786 = vsel %vm108, %v784, 0
  %788 = vmatprep.subr.mxu0 0.0
  %789 = vmatpush1.msra.mxu0 %v26
  %790 = vmatprep.subr.mxu0 0.0
  %791 = vmatpush1.msra.mxu0 %v27
  %792 = vmatprep.subr.mxu0 0.0
  %793 = vmatpush1.msra.mxu0 %v28
  %794 = vmatprep.subr.mxu0 0.0
  %795 = vmatpush1.msra.mxu0 %v29
  %796 = vmatprep.subr.mxu0 0.0
  %797 = vmatpush1.msra.mxu0 %v30
  %798 = vmatprep.subr.mxu0 0.0
  %799 = vmatpush1.msra.mxu0 %v31
  %800 = vmatprep.subr.mxu0 0.0
  %801 = vmatpush1.msra.mxu0 %v32
  %802 = vmatprep.subr.mxu0 0.0
  %803 = vmatpush1.msra.mxu0 %v33
  %804 = vmatprep.subr.mxu0 0.0
  %805 = vmatpush1.msra.mxu0 0.0
  %806 = vmatprep.subr.mxu0 0.0
  %807 = vmatpush1.msra.mxu0 0.0
  %808 = vmatprep.subr.mxu0 0.0
  %809 = vmatpush1.msra.mxu0 0.0
  %810 = vmatprep.subr.mxu0 0.0
  %811 = vmatpush1.msra.mxu0 0.0
  %812 = vmatprep.subr.mxu0 0.0
  %813 = vmatpush1.msra.mxu0 0.0
  %814 = vmatprep.subr.mxu0 0.0
  %815 = vmatpush1.msra.mxu0 0.0
  %816 = vmatprep.subr.mxu0 0.0
  %817 = vmatpush1.msra.mxu0 0.0
  %818 = vmatprep.subr.mxu0 0.0
  %819 = vmatpush1.msra.mxu0 0.0
  %820 = vmatprep.subr.mxu0 0.0
  %821 = vmatpush1.msra.mxu0 0.0
  %822 = vmatprep.subr.mxu0 0.0
  %823 = vmatpush1.msra.mxu0 0.0
  %824 = vmatprep.subr.mxu0 0.0
  %825 = vmatpush1.msra.mxu0 0.0
  %826 = vmatprep.subr.mxu0 0.0
  %827 = vmatpush1.msra.mxu0 0.0
  %828 = vmatprep.subr.mxu0 0.0
  %829 = vmatpush1.msra.mxu0 0.0
  %830 = vmatprep.subr.mxu0 0.0
  %831 = vmatpush1.msra.mxu0 0.0
  %832 = vmatprep.subr.mxu0 0.0
  %833 = vmatpush1.msra.mxu0 0.0
  %834 = vmatprep.subr.mxu0 0.0
  %835 = vmatpush1.msra.mxu0 0.0
  %836 = vmatprep.subr.mxu0 0.0
  %837 = vmatpush1.msra.mxu0 0.0
  %838 = vmatprep.subr.mxu0 0.0
  %839 = vmatpush1.msra.mxu0 0.0
  %840 = vmatprep.subr.mxu0 0.0
  %841 = vmatpush1.msra.mxu0 0.0
  %842 = vmatprep.subr.mxu0 0.0
  %843 = vmatpush1.msra.mxu0 0.0
  %844 = vmatprep.subr.mxu0 0.0
  %845 = vmatpush1.msra.mxu0 0.0
  %846 = vmatprep.subr.mxu0 0.0
  %847 = vmatpush1.msra.mxu0 0.0
  %848 = vmatprep.subr.mxu0 0.0
  %849 = vmatpush1.msra.mxu0 0.0
  %850 = vmatprep.subr.mxu0 0.0
  %851 = vmatpush1.msra.mxu0 0.0
  %852 = vmatprep.mubr.f32.mxu0 0.0
  %853 = vmatmul.mubr.f32.gmra.mrb[0].mxu0 %v786
  %v854 = vpop.f32.mrb[0].mxu0
  %v855 = vadd.f32 %v319, %v854
  %v856 = vpop.f32.mrb[0].mxu0
  %857 = vdwg.mxu0
  %v858 = vtanh.pop %v855
  %859 = vst.msk [vmem:[#allocation2 + $0x18] sm:$0xff] %vm239, %v858
  %v861 = vsel %vm239, %v779, 0
  %863 = vmatprep.subr.mxu0 0.0
  %864 = vmatpush1.msra.mxu0 %v22
  %865 = vmatprep.subr.mxu0 0.0
  %866 = vmatpush1.msra.mxu0 %v23
  %867 = vmatprep.subr.mxu0 0.0
  %868 = vmatpush1.msra.mxu0 %v24
  %869 = vmatprep.subr.mxu0 0.0
  %870 = vmatpush1.msra.mxu0 %v25
  %871 = vmatprep.subr.mxu0 0.0
  %872 = vmatpush1.msra.mxu0 0.0
  %873 = vmatprep.subr.mxu0 0.0
  %874 = vmatpush1.msra.mxu0 0.0
  %875 = vmatprep.subr.mxu0 0.0
  %876 = vmatpush1.msra.mxu0 0.0
  %877 = vmatprep.subr.mxu0 0.0
  %878 = vmatpush1.msra.mxu0 0.0
  %879 = vmatprep.subr.mxu0 0.0
  %880 = vmatpush1.msra.mxu0 0.0
  %881 = vmatprep.subr.mxu0 0.0
  %882 = vmatpush1.msra.mxu0 0.0
  %883 = vmatprep.subr.mxu0 0.0
  %884 = vmatpush1.msra.mxu0 0.0
  %885 = vmatprep.subr.mxu0 0.0
  %886 = vmatpush1.msra.mxu0 0.0
  %887 = vmatprep.subr.mxu0 0.0
  %888 = vmatpush1.msra.mxu0 0.0
  %889 = vmatprep.subr.mxu0 0.0
  %890 = vmatpush1.msra.mxu0 0.0
  %891 = vmatprep.subr.mxu0 0.0
  %892 = vmatpush1.msra.mxu0 0.0
  %893 = vmatprep.subr.mxu0 0.0
  %894 = vmatpush1.msra.mxu0 0.0
  %895 = vmatprep.subr.mxu0 0.0
  %896 = vmatpush1.msra.mxu0 0.0
  %897 = vmatprep.subr.mxu0 0.0
  %898 = vmatpush1.msra.mxu0 0.0
  %899 = vmatprep.subr.mxu0 0.0
  %900 = vmatpush1.msra.mxu0 0.0
  %901 = vmatprep.subr.mxu0 0.0
  %902 = vmatpush1.msra.mxu0 0.0
  %903 = vmatprep.subr.mxu0 0.0
  %904 = vmatpush1.msra.mxu0 0.0
  %905 = vmatprep.subr.mxu0 0.0
  %906 = vmatpush1.msra.mxu0 0.0
  %907 = vmatprep.subr.mxu0 0.0
  %908 = vmatpush1.msra.mxu0 0.0
  %909 = vmatprep.subr.mxu0 0.0
  %910 = vmatpush1.msra.mxu0 0.0
  %911 = vmatprep.subr.mxu0 0.0
  %912 = vmatpush1.msra.mxu0 0.0
  %913 = vmatprep.subr.mxu0 0.0
  %914 = vmatpush1.msra.mxu0 0.0
  %915 = vmatprep.subr.mxu0 0.0
  %916 = vmatpush1.msra.mxu0 0.0
  %917 = vmatprep.subr.mxu0 0.0
  %918 = vmatpush1.msra.mxu0 0.0
  %919 = vmatprep.subr.mxu0 0.0
  %920 = vmatpush1.msra.mxu0 0.0
  %921 = vmatprep.subr.mxu0 0.0
  %922 = vmatpush1.msra.mxu0 0.0
  %923 = vmatprep.subr.mxu0 0.0
  %924 = vmatpush1.msra.mxu0 0.0
  %925 = vmatprep.subr.mxu0 0.0
  %926 = vmatpush1.msra.mxu0 0.0
  %927 = vmatprep.mubr.f32.mxu0 0.0
  %928 = vmatmul.mubr.f32.gmra.mrb[0].mxu0 %v861
  %v929 = vpop.f32.mrb[0].mxu0
  %v930 = vadd.f32 0.0, %v929
  %v931 = vpop.f32.mrb[0].mxu0
  %932 = vdwg.mxu0
  %v933 = vadd.f32 %v225, %v930
  %v934 = vtanh.pop %v933
  %936 = vrot.lane.b32.xlu0 %v858, 32
  %v937 = vpop.permute.xlu0 %936
  %v939 = vsel %vm239, %v779, %v937
  %v941 = vsel %vm108, %v939, 0
  %943 = vmatprep.subr.mxu0 0.0
  %944 = vmatpush1.msra.mxu0 %v26
  %945 = vmatprep.subr.mxu0 0.0
  %946 = vmatpush1.msra.mxu0 %v27
  %947 = vmatprep.subr.mxu0 0.0
  %948 = vmatpush1.msra.mxu0 %v28
  %949 = vmatprep.subr.mxu0 0.0
  %950 = vmatpush1.msra.mxu0 %v29
  %951 = vmatprep.subr.mxu0 0.0
  %952 = vmatpush1.msra.mxu0 %v30
  %953 = vmatprep.subr.mxu0 0.0
  %954 = vmatpush1.msra.mxu0 %v31
  %955 = vmatprep.subr.mxu0 0.0
  %956 = vmatpush1.msra.mxu0 %v32
  %957 = vmatprep.subr.mxu0 0.0
  %958 = vmatpush1.msra.mxu0 %v33
  %959 = vmatprep.subr.mxu0 0.0
  %960 = vmatpush1.msra.mxu0 0.0
  %961 = vmatprep.subr.mxu0 0.0
  %962 = vmatpush1.msra.mxu0 0.0
  %963 = vmatprep.subr.mxu0 0.0
  %964 = vmatpush1.msra.mxu0 0.0
  %965 = vmatprep.subr.mxu0 0.0
  %966 = vmatpush1.msra.mxu0 0.0
  %967 = vmatprep.subr.mxu0 0.0
  %968 = vmatpush1.msra.mxu0 0.0
  %969 = vmatprep.subr.mxu0 0.0
  %970 = vmatpush1.msra.mxu0 0.0
  %971 = vmatprep.subr.mxu0 0.0
  %972 = vmatpush1.msra.mxu0 0.0
  %973 = vmatprep.subr.mxu0 0.0
  %974 = vmatpush1.msra.mxu0 0.0
  %975 = vmatprep.subr.mxu0 0.0
  %976 = vmatpush1.msra.mxu0 0.0
  %977 = vmatprep.subr.mxu0 0.0
  %978 = vmatpush1.msra.mxu0 0.0
  %979 = vmatprep.subr.mxu0 0.0
  %980 = vmatpush1.msra.mxu0 0.0
  %981 = vmatprep.subr.mxu0 0.0
  %982 = vmatpush1.msra.mxu0 0.0
  %983 = vmatprep.subr.mxu0 0.0
  %984 = vmatpush1.msra.mxu0 0.0
  %985 = vmatprep.subr.mxu0 0.0
  %986 = vmatpush1.msra.mxu0 0.0
  %987 = vmatprep.subr.mxu0 0.0
  %988 = vmatpush1.msra.mxu0 0.0
  %989 = vmatprep.subr.mxu0 0.0
  %990 = vmatpush1.msra.mxu0 0.0
  %991 = vmatprep.subr.mxu0 0.0
  %992 = vmatpush1.msra.mxu0 0.0
  %993 = vmatprep.subr.mxu0 0.0
  %994 = vmatpush1.msra.mxu0 0.0
  %995 = vmatprep.subr.mxu0 0.0
  %996 = vmatpush1.msra.mxu0 0.0
  %997 = vmatprep.subr.mxu0 0.0
  %998 = vmatpush1.msra.mxu0 0.0
  %999 = vmatprep.subr.mxu0 0.0
  %1000 = vmatpush1.msra.mxu0 0.0
  %1001 = vmatprep.subr.mxu0 0.0
  %1002 = vmatpush1.msra.mxu0 0.0
  %1003 = vmatprep.subr.mxu0 0.0
  %1004 = vmatpush1.msra.mxu0 0.0
  %1005 = vmatprep.subr.mxu0 0.0
  %1006 = vmatpush1.msra.mxu0 0.0
  %1007 = vmatprep.mubr.f32.mxu0 0.0
  %1008 = vmatmul.mubr.f32.gmra.mrb[0].mxu0 %v941
  %v1009 = vpop.f32.mrb[0].mxu0
  %v1010 = vadd.f32 %v319, %v1009
  %v1011 = vpop.f32.mrb[0].mxu0
  %1012 = vdwg.mxu0
  %v1013 = vtanh.pop %v1010
  %1014 = vst.msk [vmem:[#allocation2 + $0x20] sm:$0xff] %vm239, %v1013
  %v1016 = vsel %vm239, %v934, 0
  %1018 = vmatprep.subr.mxu0 0.0
  %1019 = vmatpush1.msra.mxu0 %v22
  %1020 = vmatprep.subr.mxu0 0.0
  %1021 = vmatpush1.msra.mxu0 %v23
  %1022 = vmatprep.subr.mxu0 0.0
  %1023 = vmatpush1.msra.mxu0 %v24
  %1024 = vmatprep.subr.mxu0 0.0
  %1025 = vmatpush1.msra.mxu0 %v25
  %1026 = vmatprep.subr.mxu0 0.0
  %1027 = vmatpush1.msra.mxu0 0.0
  %1028 = vmatprep.subr.mxu0 0.0
  %1029 = vmatpush1.msra.mxu0 0.0
  %1030 = vmatprep.subr.mxu0 0.0
  %1031 = vmatpush1.msra.mxu0 0.0
  %1032 = vmatprep.subr.mxu0 0.0
  %1033 = vmatpush1.msra.mxu0 0.0
  %1034 = vmatprep.subr.mxu0 0.0
  %1035 = vmatpush1.msra.mxu0 0.0
  %1036 = vmatprep.subr.mxu0 0.0
  %1037 = vmatpush1.msra.mxu0 0.0
  %1038 = vmatprep.subr.mxu0 0.0
  %1039 = vmatpush1.msra.mxu0 0.0
  %1040 = vmatprep.subr.mxu0 0.0
  %1041 = vmatpush1.msra.mxu0 0.0
  %1042 = vmatprep.subr.mxu0 0.0
  %1043 = vmatpush1.msra.mxu0 0.0
  %1044 = vmatprep.subr.mxu0 0.0
  %1045 = vmatpush1.msra.mxu0 0.0
  %1046 = vmatprep.subr.mxu0 0.0
  %1047 = vmatpush1.msra.mxu0 0.0
  %1048 = vmatprep.subr.mxu0 0.0
  %1049 = vmatpush1.msra.mxu0 0.0
  %1050 = vmatprep.subr.mxu0 0.0
  %1051 = vmatpush1.msra.mxu0 0.0
  %1052 = vmatprep.subr.mxu0 0.0
  %1053 = vmatpush1.msra.mxu0 0.0
  %1054 = vmatprep.subr.mxu0 0.0
  %1055 = vmatpush1.msra.mxu0 0.0
  %1056 = vmatprep.subr.mxu0 0.0
  %1057 = vmatpush1.msra.mxu0 0.0
  %1058 = vmatprep.subr.mxu0 0.0
  %1059 = vmatpush1.msra.mxu0 0.0
  %1060 = vmatprep.subr.mxu0 0.0
  %1061 = vmatpush1.msra.mxu0 0.0
  %1062 = vmatprep.subr.mxu0 0.0
  %1063 = vmatpush1.msra.mxu0 0.0
  %1064 = vmatprep.subr.mxu0 0.0
  %1065 = vmatpush1.msra.mxu0 0.0
  %1066 = vmatprep.subr.mxu0 0.0
  %1067 = vmatpush1.msra.mxu0 0.0
  %1068 = vmatprep.subr.mxu0 0.0
  %1069 = vmatpush1.msra.mxu0 0.0
  %1070 = vmatprep.subr.mxu0 0.0
  %1071 = vmatpush1.msra.mxu0 0.0
  %1072 = vmatprep.subr.mxu0 0.0
  %1073 = vmatpush1.msra.mxu0 0.0
  %1074 = vmatprep.subr.mxu0 0.0
  %1075 = vmatpush1.msra.mxu0 0.0
  %1076 = vmatprep.subr.mxu0 0.0
  %1077 = vmatpush1.msra.mxu0 0.0
  %1078 = vmatprep.subr.mxu0 0.0
  %1079 = vmatpush1.msra.mxu0 0.0
  %1080 = vmatprep.subr.mxu0 0.0
  %1081 = vmatpush1.msra.mxu0 0.0
  %1082 = vmatprep.mubr.f32.mxu0 0.0
  %1083 = vmatmul.mubr.f32.gmra.mrb[0].mxu0 %v1016
  %v1084 = vpop.f32.mrb[0].mxu0
  %v1085 = vadd.f32 0.0, %v1084
  %v1086 = vpop.f32.mrb[0].mxu0
  %1087 = vdwg.mxu0
  %v1088 = vadd.f32 %v230, %v1085
  %v1089 = vtanh.pop %v1088
  %1091 = vrot.lane.b32.xlu0 %v1013, 32
  %v1092 = vpop.permute.xlu0 %1091
  %v1094 = vsel %vm239, %v934, %v1092
  %v1096 = vsel %vm108, %v1094, 0
  %1098 = vmatprep.subr.mxu0 0.0
  %1099 = vmatpush1.msra.mxu0 %v26
  %1100 = vmatprep.subr.mxu0 0.0
  %1101 = vmatpush1.msra.mxu0 %v27
  %1102 = vmatprep.subr.mxu0 0.0
  %1103 = vmatpush1.msra.mxu0 %v28
  %1104 = vmatprep.subr.mxu0 0.0
  %1105 = vmatpush1.msra.mxu0 %v29
  %1106 = vmatprep.subr.mxu0 0.0
  %1107 = vmatpush1.msra.mxu0 %v30
  %1108 = vmatprep.subr.mxu0 0.0
  %1109 = vmatpush1.msra.mxu0 %v31
  %1110 = vmatprep.subr.mxu0 0.0
  %1111 = vmatpush1.msra.mxu0 %v32
  %1112 = vmatprep.subr.mxu0 0.0
  %1113 = vmatpush1.msra.mxu0 %v33
  %1114 = vmatprep.subr.mxu0 0.0
  %1115 = vmatpush1.msra.mxu0 0.0
  %1116 = vmatprep.subr.mxu0 0.0
  %1117 = vmatpush1.msra.mxu0 0.0
  %1118 = vmatprep.subr.mxu0 0.0
  %1119 = vmatpush1.msra.mxu0 0.0
  %1120 = vmatprep.subr.mxu0 0.0
  %1121 = vmatpush1.msra.mxu0 0.0
  %1122 = vmatprep.subr.mxu0 0.0
  %1123 = vmatpush1.msra.mxu0 0.0
  %1124 = vmatprep.subr.mxu0 0.0
  %1125 = vmatpush1.msra.mxu0 0.0
  %1126 = vmatprep.subr.mxu0 0.0
  %1127 = vmatpush1.msra.mxu0 0.0
  %1128 = vmatprep.subr.mxu0 0.0
  %1129 = vmatpush1.msra.mxu0 0.0
  %1130 = vmatprep.subr.mxu0 0.0
  %1131 = vmatpush1.msra.mxu0 0.0
  %1132 = vmatprep.subr.mxu0 0.0
  %1133 = vmatpush1.msra.mxu0 0.0
  %1134 = vmatprep.subr.mxu0 0.0
  %1135 = vmatpush1.msra.mxu0 0.0
  %1136 = vmatprep.subr.mxu0 0.0
  %1137 = vmatpush1.msra.mxu0 0.0
  %1138 = vmatprep.subr.mxu0 0.0
  %1139 = vmatpush1.msra.mxu0 0.0
  %1140 = vmatprep.subr.mxu0 0.0
  %1141 = vmatpush1.msra.mxu0 0.0
  %1142 = vmatprep.subr.mxu0 0.0
  %1143 = vmatpush1.msra.mxu0 0.0
  %1144 = vmatprep.subr.mxu0 0.0
  %1145 = vmatpush1.msra.mxu0 0.0
  %1146 = vmatprep.subr.mxu0 0.0
  %1147 = vmatpush1.msra.mxu0 0.0
  %1148 = vmatprep.subr.mxu0 0.0
  %1149 = vmatpush1.msra.mxu0 0.0
  %1150 = vmatprep.subr.mxu0 0.0
  %1151 = vmatpush1.msra.mxu0 0.0
  %1152 = vmatprep.subr.mxu0 0.0
  %1153 = vmatpush1.msra.mxu0 0.0
  %1154 = vmatprep.subr.mxu0 0.0
  %1155 = vmatpush1.msra.mxu0 0.0
  %1156 = vmatprep.subr.mxu0 0.0
  %1157 = vmatpush1.msra.mxu0 0.0
  %1158 = vmatprep.subr.mxu0 0.0
  %1159 = vmatpush1.msra.mxu0 0.0
  %1160 = vmatprep.subr.mxu0 0.0
  %1161 = vmatpush1.msra.mxu0 0.0
  %1162 = vmatprep.mubr.f32.mxu0 0.0
  %1163 = vmatmul.mubr.f32.gmra.mrb[0].mxu0 %v1096
  %v1164 = vpop.f32.mrb[0].mxu0
  %v1165 = vadd.f32 %v319, %v1164
  %v1166 = vpop.f32.mrb[0].mxu0
  %1167 = vdwg.mxu0
  %v1168 = vtanh.pop %v1165
  %1169 = vst.msk [vmem:[#allocation2 + $0x28] sm:$0xff] %vm239, %v1168
  %v1171 = vsel %vm239, %v1089, 0
  %1173 = vmatprep.subr.mxu0 0.0
  %1174 = vmatpush1.msra.mxu0 %v22
  %1175 = vmatprep.subr.mxu0 0.0
  %1176 = vmatpush1.msra.mxu0 %v23
  %1177 = vmatprep.subr.mxu0 0.0
  %1178 = vmatpush1.msra.mxu0 %v24
  %1179 = vmatprep.subr.mxu0 0.0
  %1180 = vmatpush1.msra.mxu0 %v25
  %1181 = vmatprep.subr.mxu0 0.0
  %1182 = vmatpush1.msra.mxu0 0.0
  %1183 = vmatprep.subr.mxu0 0.0
  %1184 = vmatpush1.msra.mxu0 0.0
  %1185 = vmatprep.subr.mxu0 0.0
  %1186 = vmatpush1.msra.mxu0 0.0
  %1187 = vmatprep.subr.mxu0 0.0
  %1188 = vmatpush1.msra.mxu0 0.0
  %1189 = vmatprep.subr.mxu0 0.0
  %1190 = vmatpush1.msra.mxu0 0.0
  %1191 = vmatprep.subr.mxu0 0.0
  %1192 = vmatpush1.msra.mxu0 0.0
  %1193 = vmatprep.subr.mxu0 0.0
  %1194 = vmatpush1.msra.mxu0 0.0
  %1195 = vmatprep.subr.mxu0 0.0
  %1196 = vmatpush1.msra.mxu0 0.0
  %1197 = vmatprep.subr.mxu0 0.0
  %1198 = vmatpush1.msra.mxu0 0.0
  %1199 = vmatprep.subr.mxu0 0.0
  %1200 = vmatpush1.msra.mxu0 0.0
  %1201 = vmatprep.subr.mxu0 0.0
  %1202 = vmatpush1.msra.mxu0 0.0
  %1203 = vmatprep.subr.mxu0 0.0
  %1204 = vmatpush1.msra.mxu0 0.0
  %1205 = vmatprep.subr.mxu0 0.0
  %1206 = vmatpush1.msra.mxu0 0.0
  %1207 = vmatprep.subr.mxu0 0.0
  %1208 = vmatpush1.msra.mxu0 0.0
  %1209 = vmatprep.subr.mxu0 0.0
  %1210 = vmatpush1.msra.mxu0 0.0
  %1211 = vmatprep.subr.mxu0 0.0
  %1212 = vmatpush1.msra.mxu0 0.0
  %1213 = vmatprep.subr.mxu0 0.0
  %1214 = vmatpush1.msra.mxu0 0.0
  %1215 = vmatprep.subr.mxu0 0.0
  %1216 = vmatpush1.msra.mxu0 0.0
  %1217 = vmatprep.subr.mxu0 0.0
  %1218 = vmatpush1.msra.mxu0 0.0
  %1219 = vmatprep.subr.mxu0 0.0
  %1220 = vmatpush1.msra.mxu0 0.0
  %1221 = vmatprep.subr.mxu0 0.0
  %1222 = vmatpush1.msra.mxu0 0.0
  %1223 = vmatprep.subr.mxu0 0.0
  %1224 = vmatpush1.msra.mxu0 0.0
  %1225 = vmatprep.subr.mxu0 0.0
  %1226 = vmatpush1.msra.mxu0 0.0
  %1227 = vmatprep.subr.mxu0 0.0
  %1228 = vmatpush1.msra.mxu0 0.0
  %1229 = vmatprep.subr.mxu0 0.0
  %1230 = vmatpush1.msra.mxu0 0.0
  %1231 = vmatprep.subr.mxu0 0.0
  %1232 = vmatpush1.msra.mxu0 0.0
  %1233 = vmatprep.subr.mxu0 0.0
  %1234 = vmatpush1.msra.mxu0 0.0
  %1235 = vmatprep.subr.mxu0 0.0
  %1236 = vmatpush1.msra.mxu0 0.0
  %1237 = vmatprep.mubr.f32.mxu0 0.0
  %1238 = vmatmul.mubr.f32.gmra.mrb[0].mxu0 %v1171
  %v1239 = vpop.f32.mrb[0].mxu0
  %v1240 = vadd.f32 0.0, %v1239
  %v1241 = vpop.f32.mrb[0].mxu0
  %1242 = vdwg.mxu0
  %v1243 = vadd.f32 %v235, %v1240
  %v1244 = vtanh.pop %v1243
  %1246 = vrot.lane.b32.xlu0 %v1168, 32
  %v1247 = vpop.permute.xlu0 %1246
  %v1249 = vsel %vm239, %v1089, %v1247
  %v1251 = vsel %vm108, %v1249, 0
  %1253 = vmatprep.subr.mxu0 0.0
  %1254 = vmatpush1.msra.mxu0 %v26
  %1255 = vmatprep.subr.mxu0 0.0
  %1256 = vmatpush1.msra.mxu0 %v27
  %1257 = vmatprep.subr.mxu0 0.0
  %1258 = vmatpush1.msra.mxu0 %v28
  %1259 = vmatprep.subr.mxu0 0.0
  %1260 = vmatpush1.msra.mxu0 %v29
  %1261 = vmatprep.subr.mxu0 0.0
  %1262 = vmatpush1.msra.mxu0 %v30
  %1263 = vmatprep.subr.mxu0 0.0
  %1264 = vmatpush1.msra.mxu0 %v31
  %1265 = vmatprep.subr.mxu0 0.0
  %1266 = vmatpush1.msra.mxu0 %v32
  %1267 = vmatprep.subr.mxu0 0.0
  %1268 = vmatpush1.msra.mxu0 %v33
  %1269 = vmatprep.subr.mxu0 0.0
  %1270 = vmatpush1.msra.mxu0 0.0
  %1271 = vmatprep.subr.mxu0 0.0
  %1272 = vmatpush1.msra.mxu0 0.0
  %1273 = vmatprep.subr.mxu0 0.0
  %1274 = vmatpush1.msra.mxu0 0.0
  %1275 = vmatprep.subr.mxu0 0.0
  %1276 = vmatpush1.msra.mxu0 0.0
  %1277 = vmatprep.subr.mxu0 0.0
  %1278 = vmatpush1.msra.mxu0 0.0
  %1279 = vmatprep.subr.mxu0 0.0
  %1280 = vmatpush1.msra.mxu0 0.0
  %1281 = vmatprep.subr.mxu0 0.0
  %1282 = vmatpush1.msra.mxu0 0.0
  %1283 = vmatprep.subr.mxu0 0.0
  %1284 = vmatpush1.msra.mxu0 0.0
  %1285 = vmatprep.subr.mxu0 0.0
  %1286 = vmatpush1.msra.mxu0 0.0
  %1287 = vmatprep.subr.mxu0 0.0
  %1288 = vmatpush1.msra.mxu0 0.0
  %1289 = vmatprep.subr.mxu0 0.0
  %1290 = vmatpush1.msra.mxu0 0.0
  %1291 = vmatprep.subr.mxu0 0.0
  %1292 = vmatpush1.msra.mxu0 0.0
  %1293 = vmatprep.subr.mxu0 0.0
  %1294 = vmatpush1.msra.mxu0 0.0
  %1295 = vmatprep.subr.mxu0 0.0
  %1296 = vmatpush1.msra.mxu0 0.0
  %1297 = vmatprep.subr.mxu0 0.0
  %1298 = vmatpush1.msra.mxu0 0.0
  %1299 = vmatprep.subr.mxu0 0.0
  %1300 = vmatpush1.msra.mxu0 0.0
  %1301 = vmatprep.subr.mxu0 0.0
  %1302 = vmatpush1.msra.mxu0 0.0
  %1303 = vmatprep.subr.mxu0 0.0
  %1304 = vmatpush1.msra.mxu0 0.0
  %1305 = vmatprep.subr.mxu0 0.0
  %1306 = vmatpush1.msra.mxu0 0.0
  %1307 = vmatprep.subr.mxu0 0.0
  %1308 = vmatpush1.msra.mxu0 0.0
  %1309 = vmatprep.subr.mxu0 0.0
  %1310 = vmatpush1.msra.mxu0 0.0
  %1311 = vmatprep.subr.mxu0 0.0
  %1312 = vmatpush1.msra.mxu0 0.0
  %1313 = vmatprep.subr.mxu0 0.0
  %1314 = vmatpush1.msra.mxu0 0.0
  %1315 = vmatprep.subr.mxu0 0.0
  %1316 = vmatpush1.msra.mxu0 0.0
  %1317 = vmatprep.mubr.f32.mxu0 0.0
  %1318 = vmatmul.mubr.f32.gmra.mrb[0].mxu0 %v1251
  %v1319 = vpop.f32.mrb[0].mxu0
  %v1320 = vadd.f32 %v319, %v1319
  %v1321 = vpop.f32.mrb[0].mxu0
  %1322 = vdwg.mxu0
  %v1323 = vtanh.pop %v1320
  %1324 = vst.msk [vmem:[#allocation2 + $0x30] sm:$0xff] %vm239, %v1323
  %1326 = vrot.lane.b32.xlu0 %v1323, 32
  %v1327 = vpop.permute.xlu0 %1326
  %v1329 = vsel %vm239, %v1244, %v1327
  %v1331 = vsel %vm108, %v1329, 0
  %1333 = vmatprep.subr.mxu0 0.0
  %1334 = vmatpush1.msra.mxu0 %v26
  %1335 = vmatprep.subr.mxu0 0.0
  %1336 = vmatpush1.msra.mxu0 %v27
  %1337 = vmatprep.subr.mxu0 0.0
  %1338 = vmatpush1.msra.mxu0 %v28
  %1339 = vmatprep.subr.mxu0 0.0
  %1340 = vmatpush1.msra.mxu0 %v29
  %1341 = vmatprep.subr.mxu0 0.0
  %1342 = vmatpush1.msra.mxu0 %v30
  %1343 = vmatprep.subr.mxu0 0.0
  %1344 = vmatpush1.msra.mxu0 %v31
  %1345 = vmatprep.subr.mxu0 0.0
  %1346 = vmatpush1.msra.mxu0 %v32
  %1347 = vmatprep.subr.mxu0 0.0
  %1348 = vmatpush1.msra.mxu0 %v33
  %1349 = vmatprep.subr.mxu0 0.0
  %1350 = vmatpush1.msra.mxu0 0.0
  %1351 = vmatprep.subr.mxu0 0.0
  %1352 = vmatpush1.msra.mxu0 0.0
  %1353 = vmatprep.subr.mxu0 0.0
  %1354 = vmatpush1.msra.mxu0 0.0
  %1355 = vmatprep.subr.mxu0 0.0
  %1356 = vmatpush1.msra.mxu0 0.0
  %1357 = vmatprep.subr.mxu0 0.0
  %1358 = vmatpush1.msra.mxu0 0.0
  %1359 = vmatprep.subr.mxu0 0.0
  %1360 = vmatpush1.msra.mxu0 0.0
  %1361 = vmatprep.subr.mxu0 0.0
  %1362 = vmatpush1.msra.mxu0 0.0
  %1363 = vmatprep.subr.mxu0 0.0
  %1364 = vmatpush1.msra.mxu0 0.0
  %1365 = vmatprep.subr.mxu0 0.0
  %1366 = vmatpush1.msra.mxu0 0.0
  %1367 = vmatprep.subr.mxu0 0.0
  %1368 = vmatpush1.msra.mxu0 0.0
  %1369 = vmatprep.subr.mxu0 0.0
  %1370 = vmatpush1.msra.mxu0 0.0
  %1371 = vmatprep.subr.mxu0 0.0
  %1372 = vmatpush1.msra.mxu0 0.0
  %1373 = vmatprep.subr.mxu0 0.0
  %1374 = vmatpush1.msra.mxu0 0.0
  %1375 = vmatprep.subr.mxu0 0.0
  %1376 = vmatpush1.msra.mxu0 0.0
  %1377 = vmatprep.subr.mxu0 0.0
  %1378 = vmatpush1.msra.mxu0 0.0
  %1379 = vmatprep.subr.mxu0 0.0
  %1380 = vmatpush1.msra.mxu0 0.0
  %1381 = vmatprep.subr.mxu0 0.0
  %1382 = vmatpush1.msra.mxu0 0.0
  %1383 = vmatprep.subr.mxu0 0.0
  %1384 = vmatpush1.msra.mxu0 0.0
  %1385 = vmatprep.subr.mxu0 0.0
  %1386 = vmatpush1.msra.mxu0 0.0
  %1387 = vmatprep.subr.mxu0 0.0
  %1388 = vmatpush1.msra.mxu0 0.0
  %1389 = vmatprep.subr.mxu0 0.0
  %1390 = vmatpush1.msra.mxu0 0.0
  %1391 = vmatprep.subr.mxu0 0.0
  %1392 = vmatpush1.msra.mxu0 0.0
  %1393 = vmatprep.subr.mxu0 0.0
  %1394 = vmatpush1.msra.mxu0 0.0
  %1395 = vmatprep.subr.mxu0 0.0
  %1396 = vmatpush1.msra.mxu0 0.0
  %1397 = vmatprep.mubr.f32.mxu0 0.0
  %1398 = vmatmul.mubr.f32.gmra.mrb[0].mxu0 %v1331
  %v1399 = vpop.f32.mrb[0].mxu0
  %v1400 = vadd.f32 %v319, %v1399
  %v1401 = vpop.f32.mrb[0].mxu0
  %1402 = vdwg.mxu0
  %v1403 = vtanh.pop %v1400
  %1404 = vst.msk [vmem:[#allocation2 + $0x38] sm:$0xff] %vm239, %v1403
  %v1405 = vld [vmem:[#allocation2] sm:$0xff]
  %v1406 = vld [vmem:[#allocation2 + $0x8] sm:$0xff]
  %v1407 = vld [vmem:[#allocation2 + $0x10] sm:$0xff]
  %v1408 = vld [vmem:[#allocation2 + $0x18] sm:$0xff]
  %v1409 = vld [vmem:[#allocation2 + $0x20] sm:$0xff]
  %v1410 = vld [vmem:[#allocation2 + $0x28] sm:$0xff]
  %v1411 = vld [vmem:[#allocation2 + $0x30] sm:$0xff]
  %v1412 = vld [vmem:[#allocation2 + $0x38] sm:$0xff]
  %v1413 = vlaneseq
  %v1414 = vshrl.u32 %v1413, 7
  %v1415 = vsub.s32 0, %v1414
  %v1416 = vrot.slane %v48, %v1415
  %v1418 = vsel %vm239, %v1405, 0
  %v1421 = vsel %vm239, %v1406, 0
  %v1424 = vsel %vm239, %v1407, 0
  %v1427 = vsel %vm239, %v1408, 0
  %v1430 = vsel %vm239, %v1409, 0
  %v1433 = vsel %vm239, %v1410, 0
  %v1436 = vsel %vm239, %v1411, 0
  %v1439 = vsel %vm239, %v1412, 0
  %1441 = vmatprep.subr.mxu0 0.0
  %1442 = vmatpush1.msra.mxu0 %v34
  %1443 = vmatprep.subr.mxu0 0.0
  %1444 = vmatpush1.msra.mxu0 %v35
  %1445 = vmatprep.subr.mxu0 0.0
  %1446 = vmatpush1.msra.mxu0 %v36
  %1447 = vmatprep.subr.mxu0 0.0
  %1448 = vmatpush1.msra.mxu0 %v37
  %1449 = vmatprep.subr.mxu0 0.0
  %1450 = vmatpush1.msra.mxu0 0.0
  %1451 = vmatprep.subr.mxu0 0.0
  %1452 = vmatpush1.msra.mxu0 0.0
  %1453 = vmatprep.subr.mxu0 0.0
  %1454 = vmatpush1.msra.mxu0 0.0
  %1455 = vmatprep.subr.mxu0 0.0
  %1456 = vmatpush1.msra.mxu0 0.0
  %1457 = vmatprep.subr.mxu0 0.0
  %1458 = vmatpush1.msra.mxu0 0.0
  %1459 = vmatprep.subr.mxu0 0.0
  %1460 = vmatpush1.msra.mxu0 0.0
  %1461 = vmatprep.subr.mxu0 0.0
  %1462 = vmatpush1.msra.mxu0 0.0
  %1463 = vmatprep.subr.mxu0 0.0
  %1464 = vmatpush1.msra.mxu0 0.0
  %1465 = vmatprep.subr.mxu0 0.0
  %1466 = vmatpush1.msra.mxu0 0.0
  %1467 = vmatprep.subr.mxu0 0.0
  %1468 = vmatpush1.msra.mxu0 0.0
  %1469 = vmatprep.subr.mxu0 0.0
  %1470 = vmatpush1.msra.mxu0 0.0
  %1471 = vmatprep.subr.mxu0 0.0
  %1472 = vmatpush1.msra.mxu0 0.0
  %1473 = vmatprep.subr.mxu0 0.0
  %1474 = vmatpush1.msra.mxu0 0.0
  %1475 = vmatprep.subr.mxu0 0.0
  %1476 = vmatpush1.msra.mxu0 0.0
  %1477 = vmatprep.subr.mxu0 0.0
  %1478 = vmatpush1.msra.mxu0 0.0
  %1479 = vmatprep.subr.mxu0 0.0
  %1480 = vmatpush1.msra.mxu0 0.0
  %1481 = vmatprep.subr.mxu0 0.0
  %1482 = vmatpush1.msra.mxu0 0.0
  %1483 = vmatprep.subr.mxu0 0.0
  %1484 = vmatpush1.msra.mxu0 0.0
  %1485 = vmatprep.subr.mxu0 0.0
  %1486 = vmatpush1.msra.mxu0 0.0
  %1487 = vmatprep.subr.mxu0 0.0
  %1488 = vmatpush1.msra.mxu0 0.0
  %1489 = vmatprep.subr.mxu0 0.0
  %1490 = vmatpush1.msra.mxu0 0.0
  %1491 = vmatprep.subr.mxu0 0.0
  %1492 = vmatpush1.msra.mxu0 0.0
  %1493 = vmatprep.subr.mxu0 0.0
  %1494 = vmatpush1.msra.mxu0 0.0
  %1495 = vmatprep.subr.mxu0 0.0
  %1496 = vmatpush1.msra.mxu0 0.0
  %1497 = vmatprep.subr.mxu0 0.0
  %1498 = vmatpush1.msra.mxu0 0.0
  %1499 = vmatprep.subr.mxu0 0.0
  %1500 = vmatpush1.msra.mxu0 0.0
  %1501 = vmatprep.subr.mxu0 0.0
  %1502 = vmatpush1.msra.mxu0 0.0
  %1503 = vmatprep.subr.mxu0 0.0
  %1504 = vmatpush1.msra.mxu0 0.0
  %1505 = vmatprep.mubr.f32.mxu0 0.0
  %1506 = vmatmul.mubr.f32.gmra.mrb[0].mxu0 %v1418
  %v1507 = vpop.f32.mrb[0].mxu0
  %v1508 = vadd.f32 %v1416, %v1507
  %v1509 = vpop.f32.mrb[0].mxu0
  %1510 = vmatprep.mubr.f32.mxu0 0.0
  %1511 = vmatmul.mubr.f32.gmra.mrb[0].mxu0 %v1421
  %v1512 = vpop.f32.mrb[0].mxu0
  %v1513 = vadd.f32 %v1416, %v1512
  %v1514 = vpop.f32.mrb[0].mxu0
  %1515 = vmatprep.mubr.f32.mxu0 0.0
  %1516 = vmatmul.mubr.f32.gmra.mrb[0].mxu0 %v1424
  %v1517 = vpop.f32.mrb[0].mxu0
  %v1518 = vadd.f32 %v1416, %v1517
  %v1519 = vpop.f32.mrb[0].mxu0
  %1520 = vmatprep.mubr.f32.mxu0 0.0
  %1521 = vmatmul.mubr.f32.gmra.mrb[0].mxu0 %v1427
  %v1522 = vpop.f32.mrb[0].mxu0
  %v1523 = vadd.f32 %v1416, %v1522
  %v1524 = vpop.f32.mrb[0].mxu0
  %1525 = vmatprep.mubr.f32.mxu0 0.0
  %1526 = vmatmul.mubr.f32.gmra.mrb[0].mxu0 %v1430
  %v1527 = vpop.f32.mrb[0].mxu0
  %v1528 = vadd.f32 %v1416, %v1527
  %v1529 = vpop.f32.mrb[0].mxu0
  %1530 = vmatprep.mubr.f32.mxu0 0.0
  %1531 = vmatmul.mubr.f32.gmra.mrb[0].mxu0 %v1433
  %v1532 = vpop.f32.mrb[0].mxu0
  %v1533 = vadd.f32 %v1416, %v1532
  %v1534 = vpop.f32.mrb[0].mxu0
  %1535 = vmatprep.mubr.f32.mxu0 0.0
  %1536 = vmatmul.mubr.f32.gmra.mrb[0].mxu0 %v1436
  %v1537 = vpop.f32.mrb[0].mxu0
  %v1538 = vadd.f32 %v1416, %v1537
  %v1539 = vpop.f32.mrb[0].mxu0
  %1540 = vmatprep.mubr.f32.mxu0 0.0
  %1541 = vmatmul.mubr.f32.gmra.mrb[0].mxu0 %v1439
  %v1542 = vpop.f32.mrb[0].mxu0
  %v1543 = vadd.f32 %v1416, %v1542
  %v1544 = vpop.f32.mrb[0].mxu0
  %1545 = vdwg.mxu0
  %v1546 = vtanh.pop %v1508
  %v1547 = vtanh.pop %v1513
  %v1548 = vtanh.pop %v1518
  %v1549 = vtanh.pop %v1523
  %v1550 = vtanh.pop %v1528
  %v1551 = vtanh.pop %v1533
  %v1552 = vtanh.pop %v1538
  %v1553 = vtanh.pop %v1543
  %v1554 = vlaneseq
  %v1555 = vshrl.u32 %v1554, 7
  %v1556 = vsub.s32 0, %v1555
  %v1557 = vrot.slane %v49, %v1556
  %v1559 = vsel %vm239, %v1546, 0
  %v1562 = vsel %vm239, %v1547, 0
  %v1565 = vsel %vm239, %v1548, 0
  %v1568 = vsel %vm239, %v1549, 0
  %v1571 = vsel %vm239, %v1550, 0
  %v1574 = vsel %vm239, %v1551, 0
  %v1577 = vsel %vm239, %v1552, 0
  %v1580 = vsel %vm239, %v1553, 0
  %1582 = vmatprep.subr.mxu0 0.0
  %1583 = vmatpush1.msra.mxu0 %v38
  %1584 = vmatprep.subr.mxu0 0.0
  %1585 = vmatpush1.msra.mxu0 %v39
  %1586 = vmatprep.subr.mxu0 0.0
  %1587 = vmatpush1.msra.mxu0 %v40
  %1588 = vmatprep.subr.mxu0 0.0
  %1589 = vmatpush1.msra.mxu0 %v41
  %1590 = vmatprep.subr.mxu0 0.0
  %1591 = vmatpush1.msra.mxu0 0.0
  %1592 = vmatprep.subr.mxu0 0.0
  %1593 = vmatpush1.msra.mxu0 0.0
  %1594 = vmatprep.subr.mxu0 0.0
  %1595 = vmatpush1.msra.mxu0 0.0
  %1596 = vmatprep.subr.mxu0 0.0
  %1597 = vmatpush1.msra.mxu0 0.0
  %1598 = vmatprep.subr.mxu0 0.0
  %1599 = vmatpush1.msra.mxu0 0.0
  %1600 = vmatprep.subr.mxu0 0.0
  %1601 = vmatpush1.msra.mxu0 0.0
  %1602 = vmatprep.subr.mxu0 0.0
  %1603 = vmatpush1.msra.mxu0 0.0
  %1604 = vmatprep.subr.mxu0 0.0
  %1605 = vmatpush1.msra.mxu0 0.0
  %1606 = vmatprep.subr.mxu0 0.0
  %1607 = vmatpush1.msra.mxu0 0.0
  %1608 = vmatprep.subr.mxu0 0.0
  %1609 = vmatpush1.msra.mxu0 0.0
  %1610 = vmatprep.subr.mxu0 0.0
  %1611 = vmatpush1.msra.mxu0 0.0
  %1612 = vmatprep.subr.mxu0 0.0
  %1613 = vmatpush1.msra.mxu0 0.0
  %1614 = vmatprep.subr.mxu0 0.0
  %1615 = vmatpush1.msra.mxu0 0.0
  %1616 = vmatprep.subr.mxu0 0.0
  %1617 = vmatpush1.msra.mxu0 0.0
  %1618 = vmatprep.subr.mxu0 0.0
  %1619 = vmatpush1.msra.mxu0 0.0
  %1620 = vmatprep.subr.mxu0 0.0
  %1621 = vmatpush1.msra.mxu0 0.0
  %1622 = vmatprep.subr.mxu0 0.0
  %1623 = vmatpush1.msra.mxu0 0.0
  %1624 = vmatprep.subr.mxu0 0.0
  %1625 = vmatpush1.msra.mxu0 0.0
  %1626 = vmatprep.subr.mxu0 0.0
  %1627 = vmatpush1.msra.mxu0 0.0
  %1628 = vmatprep.subr.mxu0 0.0
  %1629 = vmatpush1.msra.mxu0 0.0
  %1630 = vmatprep.subr.mxu0 0.0
  %1631 = vmatpush1.msra.mxu0 0.0
  %1632 = vmatprep.subr.mxu0 0.0
  %1633 = vmatpush1.msra.mxu0 0.0
  %1634 = vmatprep.subr.mxu0 0.0
  %1635 = vmatpush1.msra.mxu0 0.0
  %1636 = vmatprep.subr.mxu0 0.0
  %1637 = vmatpush1.msra.mxu0 0.0
  %1638 = vmatprep.subr.mxu0 0.0
  %1639 = vmatpush1.msra.mxu0 0.0
  %1640 = vmatprep.subr.mxu0 0.0
  %1641 = vmatpush1.msra.mxu0 0.0
  %1642 = vmatprep.subr.mxu0 0.0
  %1643 = vmatpush1.msra.mxu0 0.0
  %1644 = vmatprep.subr.mxu0 0.0
  %1645 = vmatpush1.msra.mxu0 0.0
  %1646 = vmatprep.mubr.f32.mxu0 0.0
  %1647 = vmatmul.mubr.f32.gmra.mrb[0].mxu0 %v1559
  %v1648 = vpop.f32.mrb[0].mxu0
  %v1649 = vadd.f32 %v1557, %v1648
  %v1650 = vpop.f32.mrb[0].mxu0
  %1651 = vmatprep.mubr.f32.mxu0 0.0
  %1652 = vmatmul.mubr.f32.gmra.mrb[0].mxu0 %v1562
  %v1653 = vpop.f32.mrb[0].mxu0
  %v1654 = vadd.f32 %v1557, %v1653
  %v1655 = vpop.f32.mrb[0].mxu0
  %1656 = vmatprep.mubr.f32.mxu0 0.0
  %1657 = vmatmul.mubr.f32.gmra.mrb[0].mxu0 %v1565
  %v1658 = vpop.f32.mrb[0].mxu0
  %v1659 = vadd.f32 %v1557, %v1658
  %v1660 = vpop.f32.mrb[0].mxu0
  %1661 = vmatprep.mubr.f32.mxu0 0.0
  %1662 = vmatmul.mubr.f32.gmra.mrb[0].mxu0 %v1568
  %v1663 = vpop.f32.mrb[0].mxu0
  %v1664 = vadd.f32 %v1557, %v1663
  %v1665 = vpop.f32.mrb[0].mxu0
  %1666 = vmatprep.mubr.f32.mxu0 0.0
  %1667 = vmatmul.mubr.f32.gmra.mrb[0].mxu0 %v1571
  %v1668 = vpop.f32.mrb[0].mxu0
  %v1669 = vadd.f32 %v1557, %v1668
  %v1670 = vpop.f32.mrb[0].mxu0
  %1671 = vmatprep.mubr.f32.mxu0 0.0
  %1672 = vmatmul.mubr.f32.gmra.mrb[0].mxu0 %v1574
  %v1673 = vpop.f32.mrb[0].mxu0
  %v1674 = vadd.f32 %v1557, %v1673
  %v1675 = vpop.f32.mrb[0].mxu0
  %1676 = vmatprep.mubr.f32.mxu0 0.0
  %1677 = vmatmul.mubr.f32.gmra.mrb[0].mxu0 %v1577
  %v1678 = vpop.f32.mrb[0].mxu0
  %v1679 = vadd.f32 %v1557, %v1678
  %v1680 = vpop.f32.mrb[0].mxu0
  %1681 = vmatprep.mubr.f32.mxu0 0.0
  %1682 = vmatmul.mubr.f32.gmra.mrb[0].mxu0 %v1580
  %v1683 = vpop.f32.mrb[0].mxu0
  %v1684 = vadd.f32 %v1557, %v1683
  %v1685 = vpop.f32.mrb[0].mxu0
  %1686 = vdwg.mxu0
  %v1687 = vtanh.pop %v1649
  %v1688 = vtanh.pop %v1654
  %v1689 = vtanh.pop %v1659
  %v1690 = vtanh.pop %v1664
  %v1691 = vtanh.pop %v1669
  %v1692 = vtanh.pop %v1674
  %v1693 = vtanh.pop %v1679
  %v1694 = vtanh.pop %v1684
  %v1695 = vlaneseq
  %v1696 = vshrl.u32 %v1695, 7
  %v1697 = vsub.s32 0, %v1696
  %v1698 = vrot.slane %v46, %v1697
  %v1700 = vsel %vm239, %v1687, 0
  %v1703 = vsel %vm239, %v1688, 0
  %v1706 = vsel %vm239, %v1689, 0
  %v1709 = vsel %vm239, %v1690, 0
  %v1712 = vsel %vm239, %v1691, 0
  %v1715 = vsel %vm239, %v1692, 0
  %v1718 = vsel %vm239, %v1693, 0
  %v1721 = vsel %vm239, %v1694, 0
  %1723 = vmatprep.subr.mxu0 0.0
  %1724 = vmatpush1.msra.mxu0 %v42
  %1725 = vmatprep.subr.mxu0 0.0
  %1726 = vmatpush1.msra.mxu0 %v43
  %1727 = vmatprep.subr.mxu0 0.0
  %1728 = vmatpush1.msra.mxu0 %v44
  %1729 = vmatprep.subr.mxu0 0.0
  %1730 = vmatpush1.msra.mxu0 %v45
  %1731 = vmatprep.subr.mxu0 0.0
  %1732 = vmatpush1.msra.mxu0 0.0
  %1733 = vmatprep.subr.mxu0 0.0
  %1734 = vmatpush1.msra.mxu0 0.0
  %1735 = vmatprep.subr.mxu0 0.0
  %1736 = vmatpush1.msra.mxu0 0.0
  %1737 = vmatprep.subr.mxu0 0.0
  %1738 = vmatpush1.msra.mxu0 0.0
  %1739 = vmatprep.subr.mxu0 0.0
  %1740 = vmatpush1.msra.mxu0 0.0
  %1741 = vmatprep.subr.mxu0 0.0
  %1742 = vmatpush1.msra.mxu0 0.0
  %1743 = vmatprep.subr.mxu0 0.0
  %1744 = vmatpush1.msra.mxu0 0.0
  %1745 = vmatprep.subr.mxu0 0.0
  %1746 = vmatpush1.msra.mxu0 0.0
  %1747 = vmatprep.subr.mxu0 0.0
  %1748 = vmatpush1.msra.mxu0 0.0
  %1749 = vmatprep.subr.mxu0 0.0
  %1750 = vmatpush1.msra.mxu0 0.0
  %1751 = vmatprep.subr.mxu0 0.0
  %1752 = vmatpush1.msra.mxu0 0.0
  %1753 = vmatprep.subr.mxu0 0.0
  %1754 = vmatpush1.msra.mxu0 0.0
  %1755 = vmatprep.subr.mxu0 0.0
  %1756 = vmatpush1.msra.mxu0 0.0
  %1757 = vmatprep.subr.mxu0 0.0
  %1758 = vmatpush1.msra.mxu0 0.0
  %1759 = vmatprep.subr.mxu0 0.0
  %1760 = vmatpush1.msra.mxu0 0.0
  %1761 = vmatprep.subr.mxu0 0.0
  %1762 = vmatpush1.msra.mxu0 0.0
  %1763 = vmatprep.subr.mxu0 0.0
  %1764 = vmatpush1.msra.mxu0 0.0
  %1765 = vmatprep.subr.mxu0 0.0
  %1766 = vmatpush1.msra.mxu0 0.0
  %1767 = vmatprep.subr.mxu0 0.0
  %1768 = vmatpush1.msra.mxu0 0.0
  %1769 = vmatprep.subr.mxu0 0.0
  %1770 = vmatpush1.msra.mxu0 0.0
  %1771 = vmatprep.subr.mxu0 0.0
  %1772 = vmatpush1.msra.mxu0 0.0
  %1773 = vmatprep.subr.mxu0 0.0
  %1774 = vmatpush1.msra.mxu0 0.0
  %1775 = vmatprep.subr.mxu0 0.0
  %1776 = vmatpush1.msra.mxu0 0.0
  %1777 = vmatprep.subr.mxu0 0.0
  %1778 = vmatpush1.msra.mxu0 0.0
  %1779 = vmatprep.subr.mxu0 0.0
  %1780 = vmatpush1.msra.mxu0 0.0
  %1781 = vmatprep.subr.mxu0 0.0
  %1782 = vmatpush1.msra.mxu0 0.0
  %1783 = vmatprep.subr.mxu0 0.0
  %1784 = vmatpush1.msra.mxu0 0.0
  %1785 = vmatprep.subr.mxu0 0.0
  %1786 = vmatpush1.msra.mxu0 0.0
  %1787 = vmatprep.mubr.f32.mxu0 0.0
  %1788 = vmatmul.mubr.f32.gmra.mrb[0].mxu0 %v1700
  %v1789 = vpop.f32.mrb[0].mxu0
  %v1790 = vadd.f32 %v1698, %v1789
  %v1791 = vpop.f32.mrb[0].mxu0
  %1792 = vmatprep.mubr.f32.mxu0 0.0
  %1793 = vmatmul.mubr.f32.gmra.mrb[0].mxu0 %v1703
  %v1794 = vpop.f32.mrb[0].mxu0
  %v1795 = vadd.f32 %v1698, %v1794
  %v1796 = vpop.f32.mrb[0].mxu0
  %1797 = vmatprep.mubr.f32.mxu0 0.0
  %1798 = vmatmul.mubr.f32.gmra.mrb[0].mxu0 %v1706
  %v1799 = vpop.f32.mrb[0].mxu0
  %v1800 = vadd.f32 %v1698, %v1799
  %v1801 = vpop.f32.mrb[0].mxu0
  %1802 = vmatprep.mubr.f32.mxu0 0.0
  %1803 = vmatmul.mubr.f32.gmra.mrb[0].mxu0 %v1709
  %v1804 = vpop.f32.mrb[0].mxu0
  %v1805 = vadd.f32 %v1698, %v1804
  %v1806 = vpop.f32.mrb[0].mxu0
  %1807 = vmatprep.mubr.f32.mxu0 0.0
  %1808 = vmatmul.mubr.f32.gmra.mrb[0].mxu0 %v1712
  %v1809 = vpop.f32.mrb[0].mxu0
  %v1810 = vadd.f32 %v1698, %v1809
  %v1811 = vpop.f32.mrb[0].mxu0
  %1812 = vmatprep.mubr.f32.mxu0 0.0
  %1813 = vmatmul.mubr.f32.gmra.mrb[0].mxu0 %v1715
  %v1814 = vpop.f32.mrb[0].mxu0
  %v1815 = vadd.f32 %v1698, %v1814
  %v1816 = vpop.f32.mrb[0].mxu0
  %1817 = vmatprep.mubr.f32.mxu0 0.0
  %1818 = vmatmul.mubr.f32.gmra.mrb[0].mxu0 %v1718
  %v1819 = vpop.f32.mrb[0].mxu0
  %v1820 = vadd.f32 %v1698, %v1819
  %v1821 = vpop.f32.mrb[0].mxu0
  %1822 = vmatprep.mubr.f32.mxu0 0.0
  %1823 = vmatmul.mubr.f32.gmra.mrb[0].mxu0 %v1721
  %v1824 = vpop.f32.mrb[0].mxu0
  %v1825 = vadd.f32 %v1698, %v1824
  %v1826 = vpop.f32.mrb[0].mxu0
  %1827 = vdwg.mxu0
  %1828 = vmax.xlane.f32.xlu0 %v1790
  %v1829 = vpop.xlane.xlu0 %1828
  %1830 = vmax.xlane.f32.xlu0 %v1795
  %v1831 = vpop.xlane.xlu0 %1830
  %1832 = vmax.xlane.f32.xlu0 %v1800
  %v1833 = vpop.xlane.xlu0 %1832
  %1834 = vmax.xlane.f32.xlu0 %v1805
  %v1835 = vpop.xlane.xlu0 %1834
  %1836 = vmax.xlane.f32.xlu0 %v1810
  %v1837 = vpop.xlane.xlu0 %1836
  %1838 = vmax.xlane.f32.xlu0 %v1815
  %v1839 = vpop.xlane.xlu0 %1838
  %1840 = vmax.xlane.f32.xlu0 %v1820
  %v1841 = vpop.xlane.xlu0 %1840
  %1842 = vmax.xlane.f32.xlu0 %v1825
  %v1843 = vpop.xlane.xlu0 %1842
  %v1844 = vsub.f32 %v1790, %v1829
  %v1845 = vsub.f32 %v1795, %v1831
  %v1846 = vsub.f32 %v1800, %v1833
  %v1847 = vsub.f32 %v1805, %v1835
  %v1848 = vsub.f32 %v1810, %v1837
  %v1849 = vsub.f32 %v1815, %v1839
  %v1850 = vsub.f32 %v1820, %v1841
  %v1851 = vsub.f32 %v1825, %v1843
  %v1852 = vmul.f32 %v1844, 1.442695
  %v1853 = vpow.pop %v1852
  %v1854 = vmul.f32 %v1845, 1.442695
  %v1855 = vpow.pop %v1854
  %v1856 = vmul.f32 %v1846, 1.442695
  %v1857 = vpow.pop %v1856
  %v1858 = vmul.f32 %v1847, 1.442695
  %v1859 = vpow.pop %v1858
  %v1860 = vmul.f32 %v1848, 1.442695
  %v1861 = vpow.pop %v1860
  %v1862 = vmul.f32 %v1849, 1.442695
  %v1863 = vpow.pop %v1862
  %v1864 = vmul.f32 %v1850, 1.442695
  %v1865 = vpow.pop %v1864
  %v1866 = vmul.f32 %v1851, 1.442695
  %v1867 = vpow.pop %v1866
  %1868 = vadd.xlane.f32.xlu0 %v1853
  %v1869 = vpop.xlane.xlu0 %1868
  %1870 = vadd.xlane.f32.xlu0 %v1855
  %v1871 = vpop.xlane.xlu0 %1870
  %1872 = vadd.xlane.f32.xlu0 %v1857
  %v1873 = vpop.xlane.xlu0 %1872
  %1874 = vadd.xlane.f32.xlu0 %v1859
  %v1875 = vpop.xlane.xlu0 %1874
  %1876 = vadd.xlane.f32.xlu0 %v1861
  %v1877 = vpop.xlane.xlu0 %1876
  %1878 = vadd.xlane.f32.xlu0 %v1863
  %v1879 = vpop.xlane.xlu0 %1878
  %1880 = vadd.xlane.f32.xlu0 %v1865
  %v1881 = vpop.xlane.xlu0 %1880
  %1882 = vadd.xlane.f32.xlu0 %v1867
  %v1883 = vpop.xlane.xlu0 %1882
  %v1884 = vlog2.pop %v1869
  %v1885 = vmul.f32 %v1884, 0.6931472
  %v1886 = vlog2.pop %v1871
  %v1887 = vmul.f32 %v1886, 0.6931472
  %v1888 = vlog2.pop %v1873
  %v1889 = vmul.f32 %v1888, 0.6931472
  %v1890 = vlog2.pop %v1875
  %v1891 = vmul.f32 %v1890, 0.6931472
  %v1892 = vlog2.pop %v1877
  %v1893 = vmul.f32 %v1892, 0.6931472
  %v1894 = vlog2.pop %v1879
  %v1895 = vmul.f32 %v1894, 0.6931472
  %v1896 = vlog2.pop %v1881
  %v1897 = vmul.f32 %v1896, 0.6931472
  %v1898 = vlog2.pop %v1883
  %v1899 = vmul.f32 %v1898, 0.6931472
  %v1900 = vsub.f32 %v1844, %v1885
  %v1901 = vsub.f32 %v1845, %v1887
  %v1902 = vsub.f32 %v1846, %v1889
  %v1903 = vsub.f32 %v1847, %v1891
  %v1904 = vsub.f32 %v1848, %v1893
  %v1905 = vsub.f32 %v1849, %v1895
  %v1906 = vsub.f32 %v1850, %v1897
  %v1907 = vsub.f32 %v1851, %v1899
  %1908 = vst [vmem:[%s3] sm:$0xff] %v1900
  %1909 = vst [vmem:[%s3 + $0x8] sm:$0xff] %v1901
  %1910 = vst [vmem:[%s3 + $0x10] sm:$0xff] %v1902
  %1911 = vst [vmem:[%s3 + $0x18] sm:$0xff] %v1903
  %1912 = vst [vmem:[%s3 + $0x20] sm:$0xff] %v1904
  %1913 = vst [vmem:[%s3 + $0x28] sm:$0xff] %v1905
  %1914 = vst [vmem:[%s3 + $0x30] sm:$0xff] %v1906
  %1915 = vst [vmem:[%s3 + $0x38] sm:$0xff] %v1907
  // Predicated region
  $region14: #{forward.1} parent=0 // pred_check
    _
  $region15: #{forward.1} parent=0 // pred_check_branch
    %1917 = sbr.rel (0) target = $region17
  $region16: #{forward.1} parent=0 // pred_region
    _
  $region17: #{forward.1} parent=0 // pred_fallthru
    _
  // Predicated region
  $region18: #{forward.1} parent=0 // pred_check
    _
  $region19: #{forward.1} parent=0 // pred_check_branch
    %1919 = sbr.rel (0) target = $region21
  $region20: #{forward.1} parent=0 // pred_region
    _
  $region21: #{forward.1} parent=0 // pred_fallthru
    _

</llo_original>
